<compile_context>
chip_gen: v7x
topology: tpu7x:2x2x1
jax: 0.10.0
libtpu: 0.0.40
codegen_flags: <defaults>
</compile_context>

<pallas_src>
import functools

import jax
import jax.numpy as jnp
from jax.experimental import pallas as pl
from jax.experimental.pallas import tpu as pltpu


# ----------------------------------------------------------------------------
# Per-generation VMEM budget / tile sizing
# ----------------------------------------------------------------------------
_VMEM_LIMIT = None


def _vmem_limit_bytes():
    """Per-generation VMEM limit (v5e/v6e: 128 MiB physical, v7x: 64 MiB)."""
    global _VMEM_LIMIT
    if _VMEM_LIMIT is None:
        cap = 64 * 1024 * 1024  # conservative default (v7x)
        try:
            info = pltpu.get_tpu_info()
            cap = int(getattr(info, "vmem_capacity_bytes", cap) or cap)
        except Exception:
            pass
        _VMEM_LIMIT = int(min(cap * 7 // 10, 96 * 1024 * 1024))
    return _VMEM_LIMIT


def _pick_tile_h(B, H, W, cin_total, cout, has_plane):
    """Largest divisor of H whose live VMEM footprint fits the budget."""
    limit = _vmem_limit_bytes()
    weight_bytes = 2 * (3 * 3 * cin_total) * cout * 2     # dbuf bf16 packed weights
    budget = max(int(limit * 0.6) - weight_bytes, 1 << 20)
    per_row = W * (
        4 * cin_total                      # dbuf bf16 input core blocks
        + 2 * cin_total                    # (TH+2,W,C) halo-concat copy (bf16)
        + 6 * cin_total                    # dy-merged bf16 patch (K = 3*Cin)
        + 4 * cout                         # dbuf bf16 output block
        + (4 * cout if has_plane else 0)   # dbuf bf16 coord plane
        + 24 * cout)                       # f32 per-dx results / shifts / acc
    th = max(1, budget // max(per_row, 1))
    th = int(min(th, H))
    if B == 1 and H >= 2:
        th = min(th, max(1, H // 2))       # keep >=2 tiles so a 2nd TC has work
    while H % th:
        th -= 1
    return th


# ----------------------------------------------------------------------------
# Pallas kernel: fused 3x3 'same' conv over channel-concatenated inputs
# ----------------------------------------------------------------------------
def _conv3x3_kernel(*args, n_in, TH, H, W, relu, has_plane):
    """Per grid step (b, t):
         for each input i: core_i (1,TH,W,C_i), top_i (1,1,W,C_i),
                           bot_i (1,1,W,C_i)   [halo rows, clamped index maps]
         [plane (1,TH,W,Cout)]  w_packed (3, 3*sumC, Cout)  bias (1, Cout)
         output (1, TH, W, Cout)
       The kernel builds ONE dy-merged patch (TH*W, 3*sumC), runs 3 MXU dots
       (one per dx, f32 accumulation) and combines the dx taps by shifting the
       small per-dx outputs.  Halo rows are zeroed with scalar predicates.
    """
    x_refs = args[: 3 * n_in]
    pos = 3 * n_in
    plane_ref = args[pos] if has_plane else None
    pos += 1 if has_plane else 0
    w_ref = args[pos]
    b_ref = args[pos + 1]
    o_ref = args[pos + 2]

    t = pl.program_id(1)
    cout = o_ref.shape[3]
    dt = x_refs[0].dtype

    # Scalar halo predicates (no full-width mask tensors).
    top_scale = jnp.where(t > 0, 1.0, 0.0).astype(dt)
    bot_scale = jnp.where(t < pl.num_programs(1) - 1, 1.0, 0.0).astype(dt)

    # Build the dy-merged patch once (K = 3 * sum_i C_i, order: input, dy, c).
    parts = []
    for i in range(n_in):
        core = x_refs[3 * i][0]                         # (TH, W, C_i)
        top = x_refs[3 * i + 1][0] * top_scale          # (1, W, C_i)
        bot = x_refs[3 * i + 2][0] * bot_scale          # (1, W, C_i)
        xt = jnp.concatenate([top, core, bot], axis=0)  # rows -1 .. TH
        for dy in range(3):
            parts.append(xt[dy:dy + TH])                # (TH, W, C_i)
    patch = jnp.concatenate(parts, axis=-1).reshape(TH * W, -1)

    # Three MXU passes (one per dx), f32 accumulation.
    y = [jnp.dot(patch, w_ref[dx], preferred_element_type=jnp.float32)
             .reshape(TH, W, cout)
         for dx in range(3)]

    # Combine dx taps by shifting the (small) outputs instead of the inputs.
    if W == 1:
        acc = y[1]
    else:
        zc = jnp.zeros((TH, 1, cout), jnp.float32)
        acc = (y[1]
               + jnp.concatenate([zc, y[0][:, : W - 1, :]], axis=1)
               + jnp.concatenate([y[2][:, 1:, :], zc], axis=1))

    acc = acc + b_ref[...].reshape(1, 1, cout)
    if has_plane:
        acc = acc + plane_ref[0].astype(jnp.float32)
    if relu:
        acc = jnp.maximum(acc, 0.0)
    o_ref[...] = acc.reshape(1, TH, W, cout).astype(o_ref.dtype)


def _pack_weights(weights):
    """(3,3,C_i,Cout) HWIO slices -> (3(dx), 3*sumC, Cout), dy-major per input."""
    parts = []
    for w in weights:
        w = jnp.transpose(w, (1, 0, 2, 3))              # (dx, dy, C, Cout)
        parts.append(w.reshape(3, -1, w.shape[-1]))     # (dx, 3*C, Cout)
    return jnp.concatenate(parts, axis=1)


def conv3x3(inputs, weights, bias, *, plane=None, relu=True,
            out_dtype=jnp.bfloat16, tile_h=None):
    """3x3 'same' conv of channel-concat(inputs), without materializing it.

    inputs:  list of NHWC (B, H, W, C_i) arrays (cast to bf16 for the MXU)
    weights: list of (3, 3, C_i, Cout) weight slices (same order as inputs)
    bias:    (Cout,)
    plane:   optional (1, H, W, Cout) additive plane (coord-channel conv)
    """
    B, H, W, _ = inputs[0].shape
    cout = int(weights[0].shape[-1])
    n_in = len(inputs)
    cin_total = sum(int(x.shape[-1]) for x in inputs)
    has_plane = plane is not None
    TH = tile_h if tile_h is not None else _pick_tile_h(
        B, H, W, cin_total, cout, has_plane)
    assert H % TH == 0
    nt = H // TH

    xs = [x.astype(jnp.bfloat16) for x in inputs]
    w_packed = _pack_weights([w.astype(jnp.bfloat16) for w in weights])
    b2 = bias.reshape(1, cout).astype(jnp.float32)

    in_specs, operands = [], []
    for x in xs:
        C = int(x.shape[-1])
        in_specs.append(pl.BlockSpec((1, TH, W, C), lambda b, t: (b, t, 0, 0)))
        in_specs.append(pl.BlockSpec(
            (1, 1, W, C), lambda b, t: (b, jnp.maximum(t * TH - 1, 0), 0, 0)))
        in_specs.append(pl.BlockSpec(
            (1, 1, W, C), lambda b, t: (b, jnp.minimum(t * TH + TH, H - 1), 0, 0)))
        operands += [x, x, x]
    if has_plane:
        in_specs.append(pl.BlockSpec((1, TH, W, cout), lambda b, t: (0, t, 0, 0)))
        operands.append(plane.astype(jnp.bfloat16))
    in_specs.append(pl.BlockSpec(tuple(w_packed.shape), lambda b, t: (0, 0, 0)))
    operands.append(w_packed)
    in_specs.append(pl.BlockSpec((1, cout), lambda b, t: (0, 0)))
    operands.append(b2)

    kernel = functools.partial(_conv3x3_kernel, n_in=n_in, TH=TH, H=H, W=W,
                               relu=relu, has_plane=has_plane)
    return pl.pallas_call(
        kernel,
        out_shape=jax.ShapeDtypeStruct((B, H, W, cout), out_dtype),
        grid=(B, nt),
        in_specs=in_specs,
        out_specs=pl.BlockSpec((1, TH, W, cout), lambda b, t: (b, t, 0, 0)),
        compiler_params=pltpu.CompilerParams(
            dimension_semantics=("parallel", "parallel"),
            vmem_limit_bytes=_vmem_limit_bytes(),
        ),
    )(*operands)


# ----------------------------------------------------------------------------
# XLA pieces (per perf review: first Cin=3 conv and the Cout=2 projection)
# ----------------------------------------------------------------------------
def conv3x3_first_xla(x, w, b):
    """First VGG conv (Cin=3): K=3 per tap wastes the MXU -> run in XLA."""
    y = jax.lax.conv_general_dilated(
        x.astype(jnp.bfloat16), w.astype(jnp.bfloat16),
        window_strides=(1, 1), padding="SAME",
        dimension_numbers=("NHWC", "HWIO", "NHWC"),
        preferred_element_type=jnp.float32)
    y = jnp.maximum(y + b.reshape(1, 1, 1, -1), 0.0)
    return y.astype(jnp.bfloat16)


def final_conv1x1_xla(x, w, b):
    """Final 1x1 projection (Cout = nClasses = 2): a 2-wide lane output would
    force masked partial stores in Pallas — leave the 64->2 matmul to XLA."""
    y = jnp.einsum("bhwc,cn->bhwn", x, w.astype(x.dtype),
                   preferred_element_type=jnp.float32)
    return y + b.reshape(1, 1, 1, -1)


# ----------------------------------------------------------------------------
# Plain-JAX glue (cheap relative to the conv hot path)
# TODO(synk): 2x2 max-pool, bilinear upsample and the tiny coord-plane conv
# stay in XLA — they are layout/gather glue with no meaningful Pallas win.
# ----------------------------------------------------------------------------
def maxpool2(x):
    """2x2 stride-2 max pool, NHWC, even H/W."""
    B, H, W, C = x.shape
    return x.reshape(B, H // 2, 2, W // 2, 2, C).max(axis=(2, 4))


def _resize_index_weights(out_size, in_size):
    scale = in_size / out_size
    src = (jnp.arange(out_size, dtype=jnp.float32) + 0.5) * scale - 0.5
    src = jnp.maximum(src, 0.0)  # PyTorch align_corners=False clamps at 0
    i0 = jnp.minimum(jnp.floor(src).astype(jnp.int32), in_size - 1)
    i1 = jnp.minimum(i0 + 1, in_size - 1)
    w1 = src - i0.astype(jnp.float32)
    return i0, i1, 1.0 - w1, w1


def bilinear_resize(x, Ho, Wo):
    """Bilinear resize (PyTorch interpolate, mode='bilinear', align_corners=False)."""
    _, Hi, Wi, _ = x.shape
    y0, y1, wy0, wy1 = _resize_index_weights(Ho, Hi)
    x0, x1, wx0, wx1 = _resize_index_weights(Wo, Wi)
    rows = (x[:, y0, :, :] * wy0[None, :, None, None]
            + x[:, y1, :, :] * wy1[None, :, None, None])
    out = (rows[:, :, x0, :] * wx0[None, None, :, None]
           + rows[:, :, x1, :] * wx1[None, None, :, None])
    return out


def coord_channels(H, W, off_h, off_w):
    """Coordinate channels in channel order [X, Y] (matches the torch code)."""
    a_h = jnp.arange(H, dtype=jnp.float32) / float(H) + off_h
    a_w = jnp.arange(W, dtype=jnp.float32) / float(W) + off_w
    Y = jnp.broadcast_to(a_h[:, None], (H, W))
    X = jnp.broadcast_to(a_w[None, :], (H, W))
    return jnp.stack([X, Y], axis=-1)[None]              # (1, H, W, 2)


# ----------------------------------------------------------------------------
# Parameters (deterministic synthetic init — shapes follow the PyTorch module)
# ----------------------------------------------------------------------------
def _conv_param(key, cin, cout, k=3):
    kw, kb = jax.random.split(key)
    std = (2.0 / (k * k * cin)) ** 0.5
    w = jax.random.normal(kw, (k, k, cin, cout), jnp.float32) * std
    b = jax.random.normal(kb, (cout,), jnp.float32) * 0.01
    if k == 1:
        w = w.reshape(cin, cout)
    return w, b


def init_params(key, n_classes):
    specs = {
        "vgg0": [(3, 64), (64, 64)],
        "vgg1": [(64, 128), (128, 128)],
        "vgg2": [(128, 256), (256, 256), (256, 256)],
        "vgg3": [(256, 512), (512, 512), (512, 512)],
        "vgg4": [(512, 512), (512, 512), (512, 512)],
        "smooth3": [(1024 + 4, 256), (256, 256)],
        "smooth2": [(512 + 4, 128), (128, 128)],
        "smooth1": [(256 + 4, 64), (64, 64)],
        "smooth0": [(128 + 4, 64), (64, 64)],
    }
    n_convs = sum(len(v) for v in specs.values()) + 1
    keys = list(jax.random.split(key, n_convs))
    ki = iter(keys)
    params = {
        name: [_conv_param(next(ki), cin, cout) for (cin, cout) in layer_specs]
        for name, layer_specs in specs.items()
    }
    params["final"] = _conv_param(next(ki), 64, n_classes, k=1)
    return params


# ----------------------------------------------------------------------------
# Forward pass (mirrors UNetVgg.forward)
# ----------------------------------------------------------------------------
def unet_vgg_forward(params, x_nchw, rand_key):
    x = jnp.transpose(x_nchw, (0, 2, 3, 1))              # NCHW -> NHWC
    _, H, W, _ = x.shape
    assert H % 16 == 0 and W % 16 == 0, "H, W must be divisible by 16"

    def vgg_block(h, convs, pool_first, first_conv_xla=False):
        if pool_first:
            h = maxpool2(h)
        for li, (w, b) in enumerate(convs):
            if first_conv_xla and li == 0:
                h = conv3x3_first_xla(h, w, b)
            else:
                h = conv3x3([h], [w], b, relu=True)
        return h

    feat0 = vgg_block(x, params["vgg0"], False, first_conv_xla=True)  # H,    64
    feat1 = vgg_block(feat0, params["vgg1"], True)                    # H/2,  128
    feat2 = vgg_block(feat1, params["vgg2"], True)                    # H/4,  256
    feat3 = vgg_block(feat2, params["vgg3"], True)                    # H/8,  512
    feat4 = vgg_block(feat3, params["vgg4"], True)                    # H/16, 512

    # torch.rand(1) offsets (one per axis per decoder level) -> deterministic.
    offs = jax.random.uniform(rand_key, (4, 2), jnp.float32)

    def decode(skip, deep, smooth, off):
        _, Hs, Ws, Cs = skip.shape
        Cu = deep.shape[-1]
        up = bilinear_resize(deep, Hs, Ws).astype(jnp.bfloat16)
        (w0, b0), (w1, b1) = smooth
        # Original concat order is [skip(Cs), yx(2), up(Cu), yx(2)].  We never
        # materialize it: the weight is split along Cin, the two identical yx
        # slices are summed, and the (data-independent) yx contribution is
        # precomputed as an additive plane with a tiny XLA conv so no K=2
        # matmuls ever reach the MXU.
        w_skip = w0[:, :, :Cs, :]
        w_yx = w0[:, :, Cs:Cs + 2, :] + w0[:, :, Cs + 2 + Cu:, :]
        w_up = w0[:, :, Cs + 2:Cs + 2 + Cu, :]
        yx = coord_channels(Hs, Ws, off[0], off[1])       # off[0]->Y, off[1]->X
        plane = jax.lax.conv_general_dilated(
            yx, w_yx, (1, 1), "SAME",
            dimension_numbers=("NHWC", "HWIO", "NHWC"),
            preferred_element_type=jnp.float32)           # (1, Hs, Ws, Cout0)
        h = conv3x3([skip, up], [w_skip, w_up], b0, plane=plane, relu=True)
        return conv3x3([h], [w1], b1, relu=True)

    end3 = decode(feat3, feat4, params["smooth3"], offs[0])
    end2 = decode(feat2, end3, params["smooth2"], offs[1])
    end1 = decode(feat1, end2, params["smooth1"], offs[2])
    end0 = decode(feat0, end1, params["smooth0"], offs[3])

    w_f, b_f = params["final"]
    out = final_conv1x1_xla(end0, w_f, b_f)               # (B, H, W, nClasses)
    return jnp.transpose(out, (0, 3, 1, 2))               # back to NCHW


# ----------------------------------------------------------------------------
# Self-test: fused multi-input Pallas conv (tiled, with halos, coord plane,
# dy-merged K and output-shifted dx taps) vs an XLA conv reference.
# ----------------------------------------------------------------------------
def _self_test():
    key = jax.random.PRNGKey(42)
    ks = jax.random.split(key, 6)
    B, H, W = 2, 16, 16
    chans, cout = (32, 16), 64
    xs = [jax.random.normal(k, (B, H, W, c), jnp.float32)
          for k, c in zip(ks[:2], chans)]
    ws = [jax.random.normal(k, (3, 3, c, cout), jnp.float32) * 0.05
          for k, c in zip(ks[2:4], chans)]
    b = jax.random.normal(ks[4], (cout,), jnp.float32) * 0.1
    plane = jax.random.normal(ks[5], (1, H, W, cout), jnp.float32) * 0.1

    # tile_h=4 forces 4 spatial tiles -> exercises halo DMAs and border masks.
    got = conv3x3(xs, ws, b, plane=plane, relu=True,
                  out_dtype=jnp.float32, tile_h=4)

    x_cat = jnp.concatenate([x.astype(jnp.bfloat16) for x in xs], axis=-1)
    w_cat = jnp.concatenate([w.astype(jnp.bfloat16) for w in ws], axis=2)
    ref = jax.lax.conv_general_dilated(
        x_cat, w_cat, (1, 1), "SAME",
        dimension_numbers=("NHWC", "HWIO", "NHWC"),
        preferred_element_type=jnp.float32)
    ref = ref + b.reshape(1, 1, 1, -1) + plane.astype(jnp.bfloat16).astype(jnp.float32)
    ref = jnp.maximum(ref, 0.0)

    err = float(jnp.max(jnp.abs(got - ref)))
    assert err < 5e-2, f"conv3x3 self-test failed: max abs err = {err}"


# ----------------------------------------------------------------------------
if __name__ == "__main__":
    _self_test()

    key = jax.random.PRNGKey(0)
    k_param, k_input, k_rand = jax.random.split(key, 3)

    n_classes = 2
    params = init_params(k_param, n_classes)

    # (batch, 3, H, W); H, W divisible by 16 for the 4 pooling stages.
    x = jax.random.normal(k_input, (2, 3, 32, 32), jnp.float32)

    fwd = jax.jit(unet_vgg_forward)
    out = jax.block_until_ready(fwd(params, x, k_rand))

    assert out.shape == (2, n_classes, 32, 32), out.shape
    assert bool(jnp.all(jnp.isfinite(out)))
    print("KERNEL_OK")
</pallas_src>

<mosaic_0001>
module attributes {stable_mosaic.version = 11 : i64} {
  func.func @_conv3x3_kernel(%arg0: i32, %arg1: i32, %arg2: memref<1x4x16x32xbf16, #tpu.memory_space<vmem>>, %arg3: memref<1x1x16x32xbf16, #tpu.memory_space<vmem>>, %arg4: memref<1x1x16x32xbf16, #tpu.memory_space<vmem>>, %arg5: memref<1x4x16x16xbf16, #tpu.memory_space<vmem>>, %arg6: memref<1x1x16x16xbf16, #tpu.memory_space<vmem>>, %arg7: memref<1x1x16x16xbf16, #tpu.memory_space<vmem>>, %arg8: memref<1x4x16x64xbf16, #tpu.memory_space<vmem>>, %arg9: memref<3x144x64xbf16, #tpu.memory_space<vmem>>, %arg10: memref<1x64xf32, #tpu.memory_space<vmem>>, %arg11: memref<1x4x16x64xf32, #tpu.memory_space<vmem>>) attributes {dimension_semantics = [#tpu.dimension_semantics<parallel>, #tpu.dimension_semantics<parallel>], iteration_bounds = array<i64: 2, 4>, scalar_prefetch = 0 : i64, scratch_operands = 0 : i64, tpu.core_type = #tpu.core_type<tc>, window_params = [{transform_indices = @transform_0, window_bounds = array<i64: 1, 4, 16, 32>}, {transform_indices = @transform_1, window_bounds = array<i64: 1, 1, 16, 32>}, {transform_indices = @transform_2, window_bounds = array<i64: 1, 1, 16, 32>}, {transform_indices = @transform_3, window_bounds = array<i64: 1, 4, 16, 16>}, {transform_indices = @transform_4, window_bounds = array<i64: 1, 1, 16, 16>}, {transform_indices = @transform_5, window_bounds = array<i64: 1, 1, 16, 16>}, {transform_indices = @transform_6, window_bounds = array<i64: 1, 4, 16, 64>}, {pipeline_mode = #tpu.pipeline_mode<synchronous>, transform_indices = @transform_7, window_bounds = array<i64: 3, 144, 64>}, {pipeline_mode = #tpu.pipeline_mode<synchronous>, transform_indices = @transform_8, window_bounds = array<i64: 1, 64>}, {transform_indices = @transform_9, window_bounds = array<i64: 1, 4, 16, 64>}]} {
    %c0_i32 = arith.constant 0 : i32
    %0 = arith.cmpi sgt, %arg1, %c0_i32 : i32
    %cst = arith.constant 1.000000e+00 : f32
    %cst_0 = arith.constant 0.000000e+00 : f32
    %1 = arith.select %0, %cst, %cst_0 : f32
    %2 = arith.truncf %1 : f32 to bf16
    %c3_i32 = arith.constant 3 : i32
    %3 = arith.cmpi slt, %arg1, %c3_i32 : i32
    %cst_1 = arith.constant 1.000000e+00 : f32
    %cst_2 = arith.constant 0.000000e+00 : f32
    %4 = arith.select %3, %cst_1, %cst_2 : f32
    %5 = arith.truncf %4 : f32 to bf16
    %c0 = arith.constant 0 : index
    %c0_3 = arith.constant 0 : index
    %c0_4 = arith.constant 0 : index
    %c0_5 = arith.constant 0 : index
    %6 = vector.load %arg2[%c0, %c0_3, %c0_4, %c0_5] : memref<1x4x16x32xbf16, #tpu.memory_space<vmem>>, vector<1x4x16x32xbf16>
    %7 = vector.shape_cast %6 : vector<1x4x16x32xbf16> to vector<4x16x32xbf16>
    %c0_6 = arith.constant 0 : index
    %c0_7 = arith.constant 0 : index
    %c0_8 = arith.constant 0 : index
    %c0_9 = arith.constant 0 : index
    %8 = vector.load %arg3[%c0_6, %c0_7, %c0_8, %c0_9] : memref<1x1x16x32xbf16, #tpu.memory_space<vmem>>, vector<1x1x16x32xbf16>
    %9 = vector.shape_cast %8 : vector<1x1x16x32xbf16> to vector<1x16x32xbf16>
    %10 = vector.broadcast %2 : bf16 to vector<1x16x32xbf16>
    %11 = arith.mulf %9, %10 : vector<1x16x32xbf16>
    %c0_10 = arith.constant 0 : index
    %c0_11 = arith.constant 0 : index
    %c0_12 = arith.constant 0 : index
    %c0_13 = arith.constant 0 : index
    %12 = vector.load %arg4[%c0_10, %c0_11, %c0_12, %c0_13] : memref<1x1x16x32xbf16, #tpu.memory_space<vmem>>, vector<1x1x16x32xbf16>
    %13 = vector.shape_cast %12 : vector<1x1x16x32xbf16> to vector<1x16x32xbf16>
    %14 = vector.broadcast %5 : bf16 to vector<1x16x32xbf16>
    %15 = arith.mulf %13, %14 : vector<1x16x32xbf16>
    %16 = tpu.concatenate %11, %7, %15 in 0 : vector<1x16x32xbf16>, vector<4x16x32xbf16>, vector<1x16x32xbf16> -> vector<6x16x32xbf16>
    %17 = vector.extract_strided_slice %16 {offsets = [0, 0, 0], sizes = [4, 16, 32], strides = [1, 1, 1]} : vector<6x16x32xbf16> to vector<4x16x32xbf16>
    %18 = vector.extract_strided_slice %16 {offsets = [1, 0, 0], sizes = [4, 16, 32], strides = [1, 1, 1]} : vector<6x16x32xbf16> to vector<4x16x32xbf16>
    %19 = vector.extract_strided_slice %16 {offsets = [2, 0, 0], sizes = [4, 16, 32], strides = [1, 1, 1]} : vector<6x16x32xbf16> to vector<4x16x32xbf16>
    %c0_14 = arith.constant 0 : index
    %c0_15 = arith.constant 0 : index
    %c0_16 = arith.constant 0 : index
    %c0_17 = arith.constant 0 : index
    %20 = vector.load %arg5[%c0_14, %c0_15, %c0_16, %c0_17] : memref<1x4x16x16xbf16, #tpu.memory_space<vmem>>, vector<1x4x16x16xbf16>
    %21 = vector.shape_cast %20 : vector<1x4x16x16xbf16> to vector<4x16x16xbf16>
    %c0_18 = arith.constant 0 : index
    %c0_19 = arith.constant 0 : index
    %c0_20 = arith.constant 0 : index
    %c0_21 = arith.constant 0 : index
    %22 = vector.load %arg6[%c0_18, %c0_19, %c0_20, %c0_21] : memref<1x1x16x16xbf16, #tpu.memory_space<vmem>>, vector<1x1x16x16xbf16>
    %23 = vector.shape_cast %22 : vector<1x1x16x16xbf16> to vector<1x16x16xbf16>
    %24 = vector.broadcast %2 : bf16 to vector<1x16x16xbf16>
    %25 = arith.mulf %23, %24 : vector<1x16x16xbf16>
    %c0_22 = arith.constant 0 : index
    %c0_23 = arith.constant 0 : index
    %c0_24 = arith.constant 0 : index
    %c0_25 = arith.constant 0 : index
    %26 = vector.load %arg7[%c0_22, %c0_23, %c0_24, %c0_25] : memref<1x1x16x16xbf16, #tpu.memory_space<vmem>>, vector<1x1x16x16xbf16>
    %27 = vector.shape_cast %26 : vector<1x1x16x16xbf16> to vector<1x16x16xbf16>
    %28 = vector.broadcast %5 : bf16 to vector<1x16x16xbf16>
    %29 = arith.mulf %27, %28 : vector<1x16x16xbf16>
    %30 = tpu.concatenate %25, %21, %29 in 0 : vector<1x16x16xbf16>, vector<4x16x16xbf16>, vector<1x16x16xbf16> -> vector<6x16x16xbf16>
    %31 = vector.extract_strided_slice %30 {offsets = [0, 0, 0], sizes = [4, 16, 16], strides = [1, 1, 1]} : vector<6x16x16xbf16> to vector<4x16x16xbf16>
    %32 = vector.extract_strided_slice %30 {offsets = [1, 0, 0], sizes = [4, 16, 16], strides = [1, 1, 1]} : vector<6x16x16xbf16> to vector<4x16x16xbf16>
    %33 = vector.extract_strided_slice %30 {offsets = [2, 0, 0], sizes = [4, 16, 16], strides = [1, 1, 1]} : vector<6x16x16xbf16> to vector<4x16x16xbf16>
    %34 = tpu.concatenate %17, %18, %19, %31, %32, %33 in 2 : vector<4x16x32xbf16>, vector<4x16x32xbf16>, vector<4x16x32xbf16>, vector<4x16x16xbf16>, vector<4x16x16xbf16>, vector<4x16x16xbf16> -> vector<4x16x144xbf16>
    %35 = vector.shape_cast %34 : vector<4x16x144xbf16> to vector<64x144xbf16>
    %c0_26 = arith.constant 0 : index
    %c0_27 = arith.constant 0 : index
    %c0_28 = arith.constant 0 : index
    %36 = vector.load %arg9[%c0_26, %c0_27, %c0_28] : memref<3x144x64xbf16, #tpu.memory_space<vmem>>, vector<1x144x64xbf16>
    %37 = vector.shape_cast %36 : vector<1x144x64xbf16> to vector<144x64xbf16>
    %cst_29 = arith.constant dense<0.000000e+00> : vector<64x64xf32>
    %38 = tpu.matmul %35, %37, %cst_29 {dimension_numbers = #tpu.dot_dimension_numbers<[1], [0], [0], [1], [0, 0, 1, 1], [], []>} : vector<64x144xbf16>, vector<144x64xbf16>, vector<64x64xf32> -> vector<64x64xf32>
    %39 = vector.shape_cast %38 : vector<64x64xf32> to vector<4x16x64xf32>
    %c1 = arith.constant 1 : index
    %c0_30 = arith.constant 0 : index
    %c0_31 = arith.constant 0 : index
    %40 = vector.load %arg9[%c1, %c0_30, %c0_31] : memref<3x144x64xbf16, #tpu.memory_space<vmem>>, vector<1x144x64xbf16>
    %41 = vector.shape_cast %40 : vector<1x144x64xbf16> to vector<144x64xbf16>
    %cst_32 = arith.constant dense<0.000000e+00> : vector<64x64xf32>
    %42 = tpu.matmul %35, %41, %cst_32 {dimension_numbers = #tpu.dot_dimension_numbers<[1], [0], [0], [1], [0, 0, 1, 1], [], []>} : vector<64x144xbf16>, vector<144x64xbf16>, vector<64x64xf32> -> vector<64x64xf32>
    %43 = vector.shape_cast %42 : vector<64x64xf32> to vector<4x16x64xf32>
    %c2 = arith.constant 2 : index
    %c0_33 = arith.constant 0 : index
    %c0_34 = arith.constant 0 : index
    %44 = vector.load %arg9[%c2, %c0_33, %c0_34] : memref<3x144x64xbf16, #tpu.memory_space<vmem>>, vector<1x144x64xbf16>
    %45 = vector.shape_cast %44 : vector<1x144x64xbf16> to vector<144x64xbf16>
    %cst_35 = arith.constant dense<0.000000e+00> : vector<64x64xf32>
    %46 = tpu.matmul %35, %45, %cst_35 {dimension_numbers = #tpu.dot_dimension_numbers<[1], [0], [0], [1], [0, 0, 1, 1], [], []>} : vector<64x144xbf16>, vector<144x64xbf16>, vector<64x64xf32> -> vector<64x64xf32>
    %47 = vector.shape_cast %46 : vector<64x64xf32> to vector<4x16x64xf32>
    %cst_36 = arith.constant 0.000000e+00 : f32
    %48 = vector.broadcast %cst_36 : f32 to vector<4x1x64xf32>
    %49 = vector.extract_strided_slice %39 {offsets = [0, 0, 0], sizes = [4, 15, 64], strides = [1, 1, 1]} : vector<4x16x64xf32> to vector<4x15x64xf32>
    %50 = tpu.concatenate %48, %49 in 1 : vector<4x1x64xf32>, vector<4x15x64xf32> -> vector<4x16x64xf32>
    %51 = arith.addf %43, %50 : vector<4x16x64xf32>
    %52 = vector.extract_strided_slice %47 {offsets = [0, 1, 0], sizes = [4, 15, 64], strides = [1, 1, 1]} : vector<4x16x64xf32> to vector<4x15x64xf32>
    %53 = tpu.concatenate %52, %48 in 1 : vector<4x15x64xf32>, vector<4x1x64xf32> -> vector<4x16x64xf32>
    %54 = arith.addf %51, %53 : vector<4x16x64xf32>
    %c0_37 = arith.constant 0 : index
    %c0_38 = arith.constant 0 : index
    %55 = vector.load %arg10[%c0_37, %c0_38] : memref<1x64xf32, #tpu.memory_space<vmem>>, vector<1x64xf32>
    %56 = vector.shape_cast %55 : vector<1x64xf32> to vector<1x1x64xf32>
    %57 = vector.broadcast %56 : vector<1x1x64xf32> to vector<4x16x64xf32>
    %58 = arith.addf %54, %57 : vector<4x16x64xf32>
    %c0_39 = arith.constant 0 : index
    %c0_40 = arith.constant 0 : index
    %c0_41 = arith.constant 0 : index
    %c0_42 = arith.constant 0 : index
    %59 = vector.load %arg8[%c0_39, %c0_40, %c0_41, %c0_42] : memref<1x4x16x64xbf16, #tpu.memory_space<vmem>>, vector<1x4x16x64xbf16>
    %60 = vector.shape_cast %59 : vector<1x4x16x64xbf16> to vector<4x16x64xbf16>
    %61 = arith.extf %60 : vector<4x16x64xbf16> to vector<4x16x64xf32>
    %62 = arith.addf %58, %61 : vector<4x16x64xf32>
    %cst_43 = arith.constant 0.000000e+00 : f32
    %63 = vector.broadcast %cst_43 : f32 to vector<4x16x64xf32>
    %64 = arith.maximumf %62, %63 : vector<4x16x64xf32>
    %65 = vector.shape_cast %64 : vector<4x16x64xf32> to vector<1x4x16x64xf32>
    %c0_44 = arith.constant 0 : index
    %c0_45 = arith.constant 0 : index
    %c0_46 = arith.constant 0 : index
    %c0_47 = arith.constant 0 : index
    %66 = vector.load %arg11[%c0_44, %c0_45, %c0_46, %c0_47] : memref<1x4x16x64xf32, #tpu.memory_space<vmem>>, vector<1x4x16x64xf32>
    tpu.vector_store %arg11[%c0_44, %c0_45, %c0_46, %c0_47], %65 {strides = array<i32>} : memref<1x4x16x64xf32, #tpu.memory_space<vmem>>, vector<1x4x16x64xf32>,
    return
  }
  func.func @transform_0(%arg0: i32, %arg1: i32) -> (i32, i32, i32, i32) {
    %c0_i32 = arith.constant 0 : i32
    %c0_i32_0 = arith.constant 0 : i32
    %c0_i32_1 = arith.constant 0 : i32
    return %arg0, %arg1, %c0_i32, %c0_i32_0 : i32, i32, i32, i32
  }
  func.func @transform_1(%arg0: i32, %arg1: i32) -> (i32, i32, i32, i32) {
    %c4_i32 = arith.constant 4 : i32
    %0 = arith.muli %arg1, %c4_i32 : i32
    %c1_i32 = arith.constant 1 : i32
    %1 = arith.subi %0, %c1_i32 : i32
    %c0_i32 = arith.constant 0 : i32
    %2 = arith.maxsi %1, %c0_i32 : i32
    %c0_i32_0 = arith.constant 0 : i32
    %c0_i32_1 = arith.constant 0 : i32
    %c0_i32_2 = arith.constant 0 : i32
    return %arg0, %2, %c0_i32_0, %c0_i32_1 : i32, i32, i32, i32
  }
  func.func @transform_2(%arg0: i32, %arg1: i32) -> (i32, i32, i32, i32) {
    %c4_i32 = arith.constant 4 : i32
    %0 = arith.muli %arg1, %c4_i32 : i32
    %c4_i32_0 = arith.constant 4 : i32
    %1 = arith.addi %0, %c4_i32_0 : i32
    %c15_i32 = arith.constant 15 : i32
    %2 = arith.minsi %1, %c15_i32 : i32
    %c0_i32 = arith.constant 0 : i32
    %c0_i32_1 = arith.constant 0 : i32
    %c0_i32_2 = arith.constant 0 : i32
    return %arg0, %2, %c0_i32, %c0_i32_1 : i32, i32, i32, i32
  }
  func.func @transform_3(%arg0: i32, %arg1: i32) -> (i32, i32, i32, i32) {
    %c0_i32 = arith.constant 0 : i32
    %c0_i32_0 = arith.constant 0 : i32
    %c0_i32_1 = arith.constant 0 : i32
    return %arg0, %arg1, %c0_i32, %c0_i32_0 : i32, i32, i32, i32
  }
  func.func @transform_4(%arg0: i32, %arg1: i32) -> (i32, i32, i32, i32) {
    %c4_i32 = arith.constant 4 : i32
    %0 = arith.muli %arg1, %c4_i32 : i32
    %c1_i32 = arith.constant 1 : i32
    %1 = arith.subi %0, %c1_i32 : i32
    %c0_i32 = arith.constant 0 : i32
    %2 = arith.maxsi %1, %c0_i32 : i32
    %c0_i32_0 = arith.constant 0 : i32
    %c0_i32_1 = arith.constant 0 : i32
    %c0_i32_2 = arith.constant 0 : i32
    return %arg0, %2, %c0_i32_0, %c0_i32_1 : i32, i32, i32, i32
  }
  func.func @transform_5(%arg0: i32, %arg1: i32) -> (i32, i32, i32, i32) {
    %c4_i32 = arith.constant 4 : i32
    %0 = arith.muli %arg1, %c4_i32 : i32
    %c4_i32_0 = arith.constant 4 : i32
    %1 = arith.addi %0, %c4_i32_0 : i32
    %c15_i32 = arith.constant 15 : i32
    %2 = arith.minsi %1, %c15_i32 : i32
    %c0_i32 = arith.constant 0 : i32
    %c0_i32_1 = arith.constant 0 : i32
    %c0_i32_2 = arith.constant 0 : i32
    return %arg0, %2, %c0_i32, %c0_i32_1 : i32, i32, i32, i32
  }
  func.func @transform_6(%arg0: i32, %arg1: i32) -> (i32, i32, i32, i32) {
    %c0_i32 = arith.constant 0 : i32
    %c0_i32_0 = arith.constant 0 : i32
    %c0_i32_1 = arith.constant 0 : i32
    %c0_i32_2 = arith.constant 0 : i32
    return %c0_i32, %arg1, %c0_i32_0, %c0_i32_1 : i32, i32, i32, i32
  }
  func.func @transform_7(%arg0: i32, %arg1: i32) -> (i32, i32, i32) {
    %c0_i32 = arith.constant 0 : i32
    %c0_i32_0 = arith.constant 0 : i32
    %c0_i32_1 = arith.constant 0 : i32
    %c0_i32_2 = arith.constant 0 : i32
    return %c0_i32, %c0_i32_0, %c0_i32_1 : i32, i32, i32
  }
  func.func @transform_8(%arg0: i32, %arg1: i32) -> (i32, i32) {
    %c0_i32 = arith.constant 0 : i32
    %c0_i32_0 = arith.constant 0 : i32
    %c0_i32_1 = arith.constant 0 : i32
    return %c0_i32, %c0_i32_0 : i32, i32
  }
  func.func @transform_9(%arg0: i32, %arg1: i32) -> (i32, i32, i32, i32) {
    %c0_i32 = arith.constant 0 : i32
    %c0_i32_0 = arith.constant 0 : i32
    %c0_i32_1 = arith.constant 0 : i32
    return %arg0, %arg1, %c0_i32, %c0_i32_0 : i32, i32, i32, i32
  }
}

</mosaic_0001>

<llo_original>
// kernel: tpu_custom_call.1
$region0: #{tpu_custom_call.1}
  #allocation0 [shape = 'u32[]', space=smem, size = 0x4, offset = 0x4, fixed_abs, tag = 'smem constant byte address 0x4 - core index']
  #allocation1 [shape = 'u32[144,128]{1,0:T(1,128)}', space=vmem, size = 0x12000, scoped, tag = 'internal scratch']
  %s0 = inlined_call_operand.vmem [shape: bf16[2,16,16,32], index: 0, kind: input, shape index: {}]
  %s1 = inlined_call_operand.hbm [shape: bf16[2,16,16,32], index: 1, kind: input, shape index: {}]
  %s2 = inlined_call_operand.hbm [shape: bf16[2,16,16,32], index: 2, kind: input, shape index: {}]
  %s3 = inlined_call_operand.hbm [shape: bf16[2,16,16,16], index: 3, kind: input, shape index: {}]
  %s4 = inlined_call_operand.hbm [shape: bf16[2,16,16,16], index: 4, kind: input, shape index: {}]
  %s5 = inlined_call_operand.hbm [shape: bf16[2,16,16,16], index: 5, kind: input, shape index: {}]
  %s6 = inlined_call_operand.vmem [shape: bf16[1,16,16,64], index: 6, kind: input, shape index: {}]
  %s7 = inlined_call_operand.vmem [shape: bf16[3,144,64], index: 7, kind: input, shape index: {}]
  %s8 = inlined_call_operand.vmem [shape: f32[1,64], index: 8, kind: input, shape index: {}]
  %s9 = inlined_call_operand.hbm [shape: f32[2,16,16,64], index: 9, kind: output, shape index: {}]
  %s10 = sld [smem:[#allocation0]]
  $region89: #{tpu_custom_call.1} parent=0
    _
  %s12 = ssub.s32 1, %s10
  %s13 = scalar_select 0, %s12, %s10
  $region1: #{tpu_custom_call.1} parent=0
    #allocation2 [shape = 'u8[8192]{0}', space=vmem, size = 0x2000, scoped, tag = 'input window, operand 1']
    #allocation3 [shape = 's32[2]{0}', space=sflag, size = 0x8, scoped, tag = 'scoped memory for tpu_custom_call.1']
    #allocation4 [shape = 's32[2]{0}', space=sflag, size = 0x8, scoped, tag = 'scoped memory for tpu_custom_call.1']
    #allocation5 [shape = 'u8[8192]{0}', space=vmem, size = 0x2000, scoped, tag = 'input window, operand 2']
    #allocation6 [shape = 's32[2]{0}', space=sflag, size = 0x8, scoped, tag = 'scoped memory for tpu_custom_call.1']
    #allocation7 [shape = 'u8[32768]{0}', space=vmem, size = 0x8000, scoped, tag = 'input window, operand 3']
    #allocation8 [shape = 'u8[8192]{0}', space=vmem, size = 0x2000, scoped, tag = 'input window, operand 4']
    #allocation9 [shape = 's32[2]{0}', space=sflag, size = 0x8, scoped, tag = 'scoped memory for tpu_custom_call.1']
    #allocation10 [shape = 'u8[8192]{0}', space=vmem, size = 0x2000, scoped, tag = 'input window, operand 5']
    #allocation11 [shape = 'u8[65536]{0}', space=vmem, size = 0x10000, scoped, tag = 'output window, operand 0']
    %14 = vsyncpa [#allocation3], 0
    %s15 = scalar_lea.sflag [#allocation3], 1
    %16 = vsyncpa %s15, 0
    %17 = vsyncpa [#allocation6], 0
    %s18 = scalar_lea.sflag [#allocation6], 1
    %19 = vsyncpa %s18, 0
    %20 = vsyncpa [#allocation9], 0
    %s21 = scalar_lea.sflag [#allocation9], 1
    %22 = vsyncpa %s21, 0
    %23 = vsyncpa [#allocation4], 0
    %s24 = scalar_lea.sflag [#allocation4], 1
    %25 = vsyncpa %s24, 0
    loop: start=0, step=1, limit=10
    $region2: #{tpu_custom_call.1} parent=1 // loop_pre_header
      _
    $region3: #{tpu_custom_call.1} parent=1 // loop_header
      %s27 = sphi 0, %s31
      %p28 = scmp.ge.s32.totalorder %s27, 10
      %s34 = sphi 0, %s46
      %s35 = sphi 0, %s42
      %s36 = sphi 0, %s34
      %s37 = sphi 0, %s35
      %s38 = sphi 0, %s36
      %s39 = sphi 0, %s37
      %s51 = sphi 0, %s53
      %s54 = sphi 0, %s51
      %s55 = sphi 0, %s54
      %s71 = sphi 0, %s55
      %s87 = sphi 0, %s89
      %s90 = sphi 0, %s87
      %s91 = sphi 0, %s90
      %s107 = sphi 0, %s91
      %s123 = sphi 0, %s125
      %s126 = sphi 0, %s123
      %s127 = sphi 0, %s126
      %s143 = sphi 0, %s127
      %s151 = sphi 0, %s153
      %s154 = sphi 0, %s151
      %s155 = sphi 0, %s154
      %s171 = sphi 0, %s155
      %s187 = sphi 0, %s189
      %s190 = sphi 0, %s187
      %s191 = sphi 0, %s190
      %s207 = sphi 0, %s191
      %s223 = sphi 0, %s225
      %s226 = sphi 0, %s223
      %s227 = sphi 0, %s226
      %s243 = sphi 0, %s227
      %s249 = sphi 0, %s251
      %s252 = sphi 0, %s249
      %s253 = sphi 0, %s252
      %s269 = sphi 0, %s253
      %s273 = sphi 0, %s273
      %s275 = sphi 0, %s273
      %s276 = sphi 0, %s275
      %s290 = sphi 0, %s276
      %s294 = sphi 0, %s294
      %s296 = sphi 0, %s294
      %s297 = sphi 0, %s296
      %s311 = sphi 0, %s297
      %s319 = sphi 0, %s321
      %s322 = sphi 0, %s319
      %s323 = sphi 0, %s322
      %s339 = sphi 0, %s323
    $region4: #{tpu_custom_call.1} parent=1 // loop_header_branch
      %30 = sbr.rel (%p28) target = $region8
    $region5: #{tpu_custom_call.1} parent=1 // loop_body
      %s32 = ssub.s32 %s27, 1
      %s33 = ssub.s32 %s27, 2
      %s40 = sadd.s32 1, %s35
      %p41 = scmp.ge.s32.totalorder %s40, 4
      %s42 = scalar_select %p41, 0, %s40
      %s43 = sadd.s32 1, %s34
      %s44 = scalar_select %p41, %s43, %s34
      %p45 = scmp.ge.s32.totalorder %s44, 2
      %s46 = scalar_select %p45, 0, %s44
      %s47 = ssub.s32 %s34, %s46
      %s48 = ssub.s32 %s35, %s42
      %s49 = sor.u32 %s47, %s48
      %p50 = scmp.eq.s32.totalorder %s49, 0
      %s52 = sadd.s32 %s51, 1
      %s53 = scalar_select %p50, %s51, %s52
      %p56 = pneg %p50
      %p57 = scmp.eq.s32.totalorder %s27, 7
      %p58 = por %p56, %p57
      %p59 = scmp.ne.s32.totalorder %s51, %s54
      %p60 = scmp.eq.s32.totalorder %s27, 0
      %p61 = por %p59, %p60
      %p62 = scmp.ne.s32.totalorder %s51, %s54
      %p63 = scmp.eq.s32.totalorder %s32, 7
      %p64 = por %p62, %p63
      %p65 = scmp.ne.s32.totalorder %s54, %s55
      %p66 = scmp.eq.s32.totalorder %s32, 0
      %p67 = por %p65, %p66
      %p68 = scmp.ne.s32.totalorder %s54, %s55
      %p69 = scmp.eq.s32.totalorder %s33, 7
      %p70 = por %p68, %p69
      %p72 = scmp.ne.s32.totalorder %s55, %s71
      %p73 = scmp.eq.s32.totalorder %s33, 0
      %p74 = por %p72, %p73
      %s75 = smul.u32 %s35, 4
      %s76 = ssub.s32 %s75, 1
      %p77 = scmp.gt.s32.totalorder %s76, 0
      %s78 = scalar_select %p77, %s76, 0
      %s79 = smul.u32 %s42, 4
      %s80 = ssub.s32 %s79, 1
      %p81 = scmp.gt.s32.totalorder %s80, 0
      %s82 = scalar_select %p81, %s80, 0
      %s83 = ssub.s32 %s34, %s46
      %s84 = ssub.s32 %s78, %s82
      %s85 = sor.u32 %s83, %s84
      %p86 = scmp.eq.s32.totalorder %s85, 0
      %s88 = sadd.s32 %s87, 1
      %s89 = scalar_select %p86, %s87, %s88
      %p92 = pneg %p86
      %p93 = scmp.eq.s32.totalorder %s27, 7
      %p94 = por %p92, %p93
      %p95 = scmp.ne.s32.totalorder %s87, %s90
      %p96 = scmp.eq.s32.totalorder %s27, 0
      %p97 = por %p95, %p96
      %p98 = scmp.ne.s32.totalorder %s87, %s90
      %p99 = scmp.eq.s32.totalorder %s32, 7
      %p100 = por %p98, %p99
      %p101 = scmp.ne.s32.totalorder %s90, %s91
      %p102 = scmp.eq.s32.totalorder %s32, 0
      %p103 = por %p101, %p102
      %p104 = scmp.ne.s32.totalorder %s90, %s91
      %p105 = scmp.eq.s32.totalorder %s33, 7
      %p106 = por %p104, %p105
      %p108 = scmp.ne.s32.totalorder %s91, %s107
      %p109 = scmp.eq.s32.totalorder %s33, 0
      %p110 = por %p108, %p109
      %s111 = smul.u32 %s35, 4
      %s112 = sadd.s32 %s111, 4
      %p113 = scmp.lt.s32.totalorder %s112, 15
      %s114 = scalar_select %p113, %s112, 15
      %s115 = smul.u32 %s42, 4
      %s116 = sadd.s32 %s115, 4
      %p117 = scmp.lt.s32.totalorder %s116, 15
      %s118 = scalar_select %p117, %s116, 15
      %s119 = ssub.s32 %s34, %s46
      %s120 = ssub.s32 %s114, %s118
      %s121 = sor.u32 %s119, %s120
      %p122 = scmp.eq.s32.totalorder %s121, 0
      %s124 = sadd.s32 %s123, 1
      %s125 = scalar_select %p122, %s123, %s124
      %p128 = pneg %p122
      %p129 = scmp.eq.s32.totalorder %s27, 7
      %p130 = por %p128, %p129
      %p131 = scmp.ne.s32.totalorder %s123, %s126
      %p132 = scmp.eq.s32.totalorder %s27, 0
      %p133 = por %p131, %p132
      %p134 = scmp.ne.s32.totalorder %s123, %s126
      %p135 = scmp.eq.s32.totalorder %s32, 7
      %p136 = por %p134, %p135
      %p137 = scmp.ne.s32.totalorder %s126, %s127
      %p138 = scmp.eq.s32.totalorder %s32, 0
      %p139 = por %p137, %p138
      %p140 = scmp.ne.s32.totalorder %s126, %s127
      %p141 = scmp.eq.s32.totalorder %s33, 7
      %p142 = por %p140, %p141
      %p144 = scmp.ne.s32.totalorder %s127, %s143
      %p145 = scmp.eq.s32.totalorder %s33, 0
      %p146 = por %p144, %p145
      %s147 = ssub.s32 %s34, %s46
      %s148 = ssub.s32 %s35, %s42
      %s149 = sor.u32 %s147, %s148
      %p150 = scmp.eq.s32.totalorder %s149, 0
      %s152 = sadd.s32 %s151, 1
      %s153 = scalar_select %p150, %s151, %s152
      %p156 = pneg %p150
      %p157 = scmp.eq.s32.totalorder %s27, 7
      %p158 = por %p156, %p157
      %p159 = scmp.ne.s32.totalorder %s151, %s154
      %p160 = scmp.eq.s32.totalorder %s27, 0
      %p161 = por %p159, %p160
      %p162 = scmp.ne.s32.totalorder %s151, %s154
      %p163 = scmp.eq.s32.totalorder %s32, 7
      %p164 = por %p162, %p163
      %p165 = scmp.ne.s32.totalorder %s154, %s155
      %p166 = scmp.eq.s32.totalorder %s32, 0
      %p167 = por %p165, %p166
      %p168 = scmp.ne.s32.totalorder %s154, %s155
      %p169 = scmp.eq.s32.totalorder %s33, 7
      %p170 = por %p168, %p169
      %p172 = scmp.ne.s32.totalorder %s155, %s171
      %p173 = scmp.eq.s32.totalorder %s33, 0
      %p174 = por %p172, %p173
      %s175 = smul.u32 %s35, 4
      %s176 = ssub.s32 %s175, 1
      %p177 = scmp.gt.s32.totalorder %s176, 0
      %s178 = scalar_select %p177, %s176, 0
      %s179 = smul.u32 %s42, 4
      %s180 = ssub.s32 %s179, 1
      %p181 = scmp.gt.s32.totalorder %s180, 0
      %s182 = scalar_select %p181, %s180, 0
      %s183 = ssub.s32 %s34, %s46
      %s184 = ssub.s32 %s178, %s182
      %s185 = sor.u32 %s183, %s184
      %p186 = scmp.eq.s32.totalorder %s185, 0
      %s188 = sadd.s32 %s187, 1
      %s189 = scalar_select %p186, %s187, %s188
      %p192 = pneg %p186
      %p193 = scmp.eq.s32.totalorder %s27, 7
      %p194 = por %p192, %p193
      %p195 = scmp.ne.s32.totalorder %s187, %s190
      %p196 = scmp.eq.s32.totalorder %s27, 0
      %p197 = por %p195, %p196
      %p198 = scmp.ne.s32.totalorder %s187, %s190
      %p199 = scmp.eq.s32.totalorder %s32, 7
      %p200 = por %p198, %p199
      %p201 = scmp.ne.s32.totalorder %s190, %s191
      %p202 = scmp.eq.s32.totalorder %s32, 0
      %p203 = por %p201, %p202
      %p204 = scmp.ne.s32.totalorder %s190, %s191
      %p205 = scmp.eq.s32.totalorder %s33, 7
      %p206 = por %p204, %p205
      %p208 = scmp.ne.s32.totalorder %s191, %s207
      %p209 = scmp.eq.s32.totalorder %s33, 0
      %p210 = por %p208, %p209
      %s211 = smul.u32 %s35, 4
      %s212 = sadd.s32 %s211, 4
      %p213 = scmp.lt.s32.totalorder %s212, 15
      %s214 = scalar_select %p213, %s212, 15
      %s215 = smul.u32 %s42, 4
      %s216 = sadd.s32 %s215, 4
      %p217 = scmp.lt.s32.totalorder %s216, 15
      %s218 = scalar_select %p217, %s216, 15
      %s219 = ssub.s32 %s34, %s46
      %s220 = ssub.s32 %s214, %s218
      %s221 = sor.u32 %s219, %s220
      %p222 = scmp.eq.s32.totalorder %s221, 0
      %s224 = sadd.s32 %s223, 1
      %s225 = scalar_select %p222, %s223, %s224
      %p228 = pneg %p222
      %p229 = scmp.eq.s32.totalorder %s27, 7
      %p230 = por %p228, %p229
      %p231 = scmp.ne.s32.totalorder %s223, %s226
      %p232 = scmp.eq.s32.totalorder %s27, 0
      %p233 = por %p231, %p232
      %p234 = scmp.ne.s32.totalorder %s223, %s226
      %p235 = scmp.eq.s32.totalorder %s32, 7
      %p236 = por %p234, %p235
      %p237 = scmp.ne.s32.totalorder %s226, %s227
      %p238 = scmp.eq.s32.totalorder %s32, 0
      %p239 = por %p237, %p238
      %p240 = scmp.ne.s32.totalorder %s226, %s227
      %p241 = scmp.eq.s32.totalorder %s33, 7
      %p242 = por %p240, %p241
      %p244 = scmp.ne.s32.totalorder %s227, %s243
      %p245 = scmp.eq.s32.totalorder %s33, 0
      %p246 = por %p244, %p245
      %s247 = ssub.s32 %s35, %s42
      %p248 = scmp.eq.s32.totalorder %s247, 0
      %s250 = sadd.s32 %s249, 1
      %s251 = scalar_select %p248, %s249, %s250
      %p254 = pneg %p248
      %p255 = scmp.eq.s32.totalorder %s27, 7
      %p256 = por %p254, %p255
      %p257 = scmp.ne.s32.totalorder %s249, %s252
      %p258 = scmp.eq.s32.totalorder %s27, 0
      %p259 = por %p257, %p258
      %p260 = scmp.ne.s32.totalorder %s249, %s252
      %p261 = scmp.eq.s32.totalorder %s32, 7
      %p262 = por %p260, %p261
      %p263 = scmp.ne.s32.totalorder %s252, %s253
      %p264 = scmp.eq.s32.totalorder %s32, 0
      %p265 = por %p263, %p264
      %p266 = scmp.ne.s32.totalorder %s252, %s253
      %p267 = scmp.eq.s32.totalorder %s33, 7
      %p268 = por %p266, %p267
      %p270 = scmp.ne.s32.totalorder %s253, %s269
      %p271 = scmp.eq.s32.totalorder %s33, 0
      %p272 = por %p270, %p271
      %s274 = sadd.s32 %s273, 1
      %p277 = scmp.eq.s32.totalorder %s27, 7
      %p278 = scmp.ne.s32.totalorder %s273, %s275
      %p279 = scmp.eq.s32.totalorder %s27, 0
      %p280 = por %p278, %p279
      %p281 = scmp.ne.s32.totalorder %s273, %s275
      %p282 = scmp.eq.s32.totalorder %s32, 7
      %p283 = por %p281, %p282
      %p284 = scmp.ne.s32.totalorder %s275, %s276
      %p285 = scmp.eq.s32.totalorder %s32, 0
      %p286 = por %p284, %p285
      %p287 = scmp.ne.s32.totalorder %s275, %s276
      %p288 = scmp.eq.s32.totalorder %s33, 7
      %p289 = por %p287, %p288
      %p291 = scmp.ne.s32.totalorder %s276, %s290
      %p292 = scmp.eq.s32.totalorder %s33, 0
      %p293 = por %p291, %p292
      %s295 = sadd.s32 %s294, 1
      %p298 = scmp.eq.s32.totalorder %s27, 7
      %p299 = scmp.ne.s32.totalorder %s294, %s296
      %p300 = scmp.eq.s32.totalorder %s27, 0
      %p301 = por %p299, %p300
      %p302 = scmp.ne.s32.totalorder %s294, %s296
      %p303 = scmp.eq.s32.totalorder %s32, 7
      %p304 = por %p302, %p303
      %p305 = scmp.ne.s32.totalorder %s296, %s297
      %p306 = scmp.eq.s32.totalorder %s32, 0
      %p307 = por %p305, %p306
      %p308 = scmp.ne.s32.totalorder %s296, %s297
      %p309 = scmp.eq.s32.totalorder %s33, 7
      %p310 = por %p308, %p309
      %p312 = scmp.ne.s32.totalorder %s297, %s311
      %p313 = scmp.eq.s32.totalorder %s33, 0
      %p314 = por %p312, %p313
      %s315 = ssub.s32 %s34, %s46
      %s316 = ssub.s32 %s35, %s42
      %s317 = sor.u32 %s315, %s316
      %p318 = scmp.eq.s32.totalorder %s317, 0
      %s320 = sadd.s32 %s319, 1
      %s321 = scalar_select %p318, %s319, %s320
      %p324 = pneg %p318
      %p325 = scmp.eq.s32.totalorder %s27, 7
      %p326 = por %p324, %p325
      %p327 = scmp.ne.s32.totalorder %s319, %s322
      %p328 = scmp.eq.s32.totalorder %s27, 0
      %p329 = por %p327, %p328
      %p330 = scmp.ne.s32.totalorder %s319, %s322
      %p331 = scmp.eq.s32.totalorder %s32, 7
      %p332 = por %p330, %p331
      %p333 = scmp.ne.s32.totalorder %s322, %s323
      %p334 = scmp.eq.s32.totalorder %s32, 0
      %p335 = por %p333, %p334
      %p336 = scmp.ne.s32.totalorder %s322, %s323
      %p337 = scmp.eq.s32.totalorder %s33, 7
      %p338 = por %p336, %p337
      %p340 = scmp.ne.s32.totalorder %s323, %s339
      %p341 = scmp.eq.s32.totalorder %s33, 0
      %p342 = por %p340, %p341
      %p343 = scmp.le.s32.totalorder 1, %s27
      %p344 = scmp.lt.s32.totalorder %s27, 9
      %p345 = pnand %p343, %p344
      %p346 = pneg %p345
      // Predicated region
      $region9: #{tpu_custom_call.1} parent=5 // pred_check
        _
      $region10: #{tpu_custom_call.1} parent=5 // pred_check_branch
        %348 = sbr.rel (%p345) target = $region12
      $region11: #{tpu_custom_call.1} parent=5 // pred_region
        %s349 = ssub.s32 %s27, 1
        // Predicated region
        $region13: #{tpu_custom_call.1} parent=11 // pred_check
          %p350 = pneg %p286
        $region14: #{tpu_custom_call.1} parent=11 // pred_check_branch
          %352 = sbr.rel (%p350) target = $region16
        $region15: #{tpu_custom_call.1} parent=11 // pred_region
          _
        $region16: #{tpu_custom_call.1} parent=11 // pred_fallthru
          _
        // Predicated region
        $region17: #{tpu_custom_call.1} parent=11 // pred_check
          %p353 = pneg %p307
        $region18: #{tpu_custom_call.1} parent=11 // pred_check_branch
          %355 = sbr.rel (%p353) target = $region20
        $region19: #{tpu_custom_call.1} parent=11 // pred_region
          _
        $region20: #{tpu_custom_call.1} parent=11 // pred_fallthru
          _
      $region12: #{tpu_custom_call.1} parent=5 // pred_fallthru
        _
      %p356 = scmp.lt.s32.totalorder %s27, 8
      // Predicated region
      $region21: #{tpu_custom_call.1} parent=5 // pred_check
        %p357 = pneg %p356
      $region22: #{tpu_custom_call.1} parent=5 // pred_check_branch
        %359 = sbr.rel (%p357) target = $region24
      $region23: #{tpu_custom_call.1} parent=5 // pred_region
        // Predicated region
        $region25: #{tpu_custom_call.1} parent=23 // pred_check
          %p360 = pneg %p61
        $region26: #{tpu_custom_call.1} parent=23 // pred_check_branch
          %362 = sbr.rel (%p360) target = $region28
        $region27: #{tpu_custom_call.1} parent=23 // pred_region
          %s363 = smul.u32 4, %s35
          %p364 = scmp.lt.s32.totalorder %s34, 1
          %s365 = scalar_select %p364, %s34, 1
          %p366 = scmp.lt.s32.totalorder %s363, 15
          %s367 = scalar_select %p366, %s363, 15
          %s368 = smul.addr %s367, 2
          %s369 = smul.addr %s365, 32
          %s370 = sadd.s32 %s368, %s369
          %s371 = smul.addr %s370, 4
          %s372 = scalar_lea.vmem %s0, %s371
          %s373 = smul.u32 4, %s35
        $region28: #{tpu_custom_call.1} parent=23 // pred_fallthru
          _
        // Predicated region
        $region29: #{tpu_custom_call.1} parent=23 // pred_check
          %p374 = pneg %p97
        $region30: #{tpu_custom_call.1} parent=23 // pred_check_branch
          %376 = sbr.rel (%p374) target = $region32
        $region31: #{tpu_custom_call.1} parent=23 // pred_region
          %s377 = sand.u32 %s87, 1
          %s378 = scalar_lea.sflag [#allocation3], %s377
          %s379 = sand.u32 %s87, 1
          %s380 = smul.addr %s379, 8
          %s381 = scalar_lea.vmem [#allocation2], %s380
          %s382 = smul.u32 %s35, 4
          %s383 = ssub.s32 %s382, 1
          %p384 = scmp.gt.s32.totalorder %s383, 0
          %s385 = scalar_select %p384, %s383, 0
          %s387 = ssub.s32 128, 128
          %388 = vsyncadd %s378, %s387
          %s389 = smul.addr %s385, 2
          %s390 = smul.addr %s34, 32
          %s391 = sadd.s32 %s389, %s390
          %s392 = smul.addr %s391, 64
          %s393 = scalar_lea.hbm %s1, %s392
          %s394 = sshll.u32 %s381, 4
          %s395 = int_to_ptr.vmem [resolvable:$true] %s394
          %400 = dma.hbm_to_vmem [thread:$0]  %s393, 128, %s395, %s378, 64, 64, 4
        $region32: #{tpu_custom_call.1} parent=23 // pred_fallthru
          _
        // Predicated region
        $region33: #{tpu_custom_call.1} parent=23 // pred_check
          %p401 = pneg %p133
        $region34: #{tpu_custom_call.1} parent=23 // pred_check_branch
          %403 = sbr.rel (%p401) target = $region36
        $region35: #{tpu_custom_call.1} parent=23 // pred_region
          %s404 = sand.u32 %s27, 1
          %s405 = scalar_lea.sflag [#allocation6], %s404
          %s406 = sand.u32 %s123, 1
          %s407 = smul.addr %s406, 8
          %s408 = scalar_lea.vmem [#allocation5], %s407
          %s409 = smul.u32 %s35, 4
          %s410 = sadd.s32 %s409, 4
          %p411 = scmp.lt.s32.totalorder %s410, 15
          %s412 = scalar_select %p411, %s410, 15
          %s414 = ssub.s32 128, 128
          %415 = vsyncadd %s405, %s414
          %s416 = smul.addr %s412, 2
          %s417 = smul.addr %s34, 32
          %s418 = sadd.s32 %s416, %s417
          %s419 = smul.addr %s418, 64
          %s420 = scalar_lea.hbm %s2, %s419
          %s421 = sshll.u32 %s408, 4
          %s422 = int_to_ptr.vmem [resolvable:$true] %s421
          %427 = dma.hbm_to_vmem [thread:$0]  %s420, 128, %s422, %s405, 64, 64, 4
        $region36: #{tpu_custom_call.1} parent=23 // pred_fallthru
          _
        // Predicated region
        $region37: #{tpu_custom_call.1} parent=23 // pred_check
          %p428 = pneg %p161
        $region38: #{tpu_custom_call.1} parent=23 // pred_check_branch
          %430 = sbr.rel (%p428) target = $region40
        $region39: #{tpu_custom_call.1} parent=23 // pred_region
          %s431 = sand.u32 %s27, 1
          %s432 = scalar_lea.sflag [#allocation6], %s431
          %s433 = sand.u32 %s151, 1
          %s434 = smul.addr %s433, 32
          %s435 = scalar_lea.vmem [#allocation7], %s434
          %s436 = smul.u32 4, %s35
          %s438 = ssub.s32 512, 512
          %439 = vsyncadd %s432, %s438
          %s440 = smul.addr %s436, 2
          %s441 = smul.addr %s34, 32
          %s442 = sadd.s32 %s440, %s441
          %s443 = smul.addr %s442, 64
          %s444 = scalar_lea.hbm %s3, %s443
          %s445 = sshll.u32 %s435, 4
          %s446 = int_to_ptr.vmem [resolvable:$true] %s445
          %451 = dma.hbm_to_vmem [thread:$0]  %s444, 512, %s446, %s432, 64, 64, 4
        $region40: #{tpu_custom_call.1} parent=23 // pred_fallthru
          _
        // Predicated region
        $region41: #{tpu_custom_call.1} parent=23 // pred_check
          %p452 = pneg %p197
        $region42: #{tpu_custom_call.1} parent=23 // pred_check_branch
          %454 = sbr.rel (%p452) target = $region44
        $region43: #{tpu_custom_call.1} parent=23 // pred_region
          %s455 = sand.u32 %s27, 1
          %s456 = scalar_lea.sflag [#allocation9], %s455
          %s457 = sand.u32 %s187, 1
          %s458 = smul.addr %s457, 8
          %s459 = scalar_lea.vmem [#allocation8], %s458
          %s460 = smul.u32 %s35, 4
          %s461 = ssub.s32 %s460, 1
          %p462 = scmp.gt.s32.totalorder %s461, 0
          %s463 = scalar_select %p462, %s461, 0
          %s465 = ssub.s32 128, 128
          %466 = vsyncadd %s456, %s465
          %s467 = smul.addr %s463, 2
          %s468 = smul.addr %s34, 32
          %s469 = sadd.s32 %s467, %s468
          %s470 = smul.addr %s469, 64
          %s471 = scalar_lea.hbm %s4, %s470
          %s472 = sshll.u32 %s459, 4
          %s473 = int_to_ptr.vmem [resolvable:$true] %s472
          %478 = dma.hbm_to_vmem [thread:$0]  %s471, 128, %s473, %s456, 64, 64, 4
        $region44: #{tpu_custom_call.1} parent=23 // pred_fallthru
          _
        // Predicated region
        $region45: #{tpu_custom_call.1} parent=23 // pred_check
          %p479 = pneg %p233
        $region46: #{tpu_custom_call.1} parent=23 // pred_check_branch
          %481 = sbr.rel (%p479) target = $region48
        $region47: #{tpu_custom_call.1} parent=23 // pred_region
          %s482 = sand.u32 %s27, 1
          %s483 = scalar_lea.sflag [#allocation9], %s482
          %s484 = sand.u32 %s223, 1
          %s485 = smul.addr %s484, 8
          %s486 = scalar_lea.vmem [#allocation10], %s485
          %s487 = smul.u32 %s35, 4
          %s488 = sadd.s32 %s487, 4
          %p489 = scmp.lt.s32.totalorder %s488, 15
          %s490 = scalar_select %p489, %s488, 15
          %s492 = ssub.s32 128, 128
          %493 = vsyncadd %s483, %s492
          %s494 = smul.addr %s490, 2
          %s495 = smul.addr %s34, 32
          %s496 = sadd.s32 %s494, %s495
          %s497 = smul.addr %s496, 64
          %s498 = scalar_lea.hbm %s5, %s497
          %s499 = sshll.u32 %s486, 4
          %s500 = int_to_ptr.vmem [resolvable:$true] %s499
          %505 = dma.hbm_to_vmem [thread:$0]  %s498, 128, %s500, %s483, 64, 64, 4
        $region48: #{tpu_custom_call.1} parent=23 // pred_fallthru
          _
        // Predicated region
        $region49: #{tpu_custom_call.1} parent=23 // pred_check
          %p506 = pneg %p259
        $region50: #{tpu_custom_call.1} parent=23 // pred_check_branch
          %508 = sbr.rel (%p506) target = $region52
        $region51: #{tpu_custom_call.1} parent=23 // pred_region
          %s509 = smul.u32 4, %s35
          %p510 = scmp.lt.s32.totalorder %s509, 15
          %s511 = scalar_select %p510, %s509, 15
          %s512 = smul.addr %s511, 2
          %s513 = smul.addr %s512, 4
          %s514 = scalar_lea.vmem %s6, %s513
          %s515 = smul.u32 4, %s35
        $region52: #{tpu_custom_call.1} parent=23 // pred_fallthru
          _
      $region24: #{tpu_custom_call.1} parent=5 // pred_fallthru
        _
      %p516 = scmp.le.s32.totalorder 1, %s27
      %p517 = scmp.lt.s32.totalorder %s27, 9
      %p518 = pnand %p516, %p517
      %p519 = pneg %p518
      // Predicated region
      $region53: #{tpu_custom_call.1} parent=5 // pred_check
        _
      $region54: #{tpu_custom_call.1} parent=5 // pred_check_branch
        %521 = sbr.rel (%p518) target = $region56
      $region55: #{tpu_custom_call.1} parent=5 // pred_region
        %s522 = ssub.s32 %s27, 1
        %s523 = sand.u32 %s90, 1
        %s524 = scalar_lea.sflag [#allocation3], %s523
        %s525 = sand.u32 %s90, 1
        %s526 = smul.addr %s525, 8
        %s527 = scalar_lea.vmem [#allocation2], %s526
        // Predicated region
        $region57: #{tpu_custom_call.1} parent=55 // pred_check
          %p528 = pneg %p103
        $region58: #{tpu_custom_call.1} parent=55 // pred_check_branch
          %530 = sbr.rel (%p528) target = $region60
        $region59: #{tpu_custom_call.1} parent=55 // pred_region
          %531 = dma.done %s524, 128
        $region60: #{tpu_custom_call.1} parent=55 // pred_fallthru
          _
        %s532 = sand.u32 %s32, 1
        %s533 = scalar_lea.sflag [#allocation6], %s532
        %s534 = sand.u32 %s126, 1
        %s535 = smul.addr %s534, 8
        %s536 = scalar_lea.vmem [#allocation5], %s535
        // Predicated region
        $region61: #{tpu_custom_call.1} parent=55 // pred_check
          %p537 = pneg %p139
        $region62: #{tpu_custom_call.1} parent=55 // pred_check_branch
          %539 = sbr.rel (%p537) target = $region64
        $region63: #{tpu_custom_call.1} parent=55 // pred_region
          %540 = dma.done %s533, 128
        $region64: #{tpu_custom_call.1} parent=55 // pred_fallthru
          _
        %s541 = sand.u32 %s32, 1
        %s542 = scalar_lea.sflag [#allocation6], %s541
        %s543 = sand.u32 %s154, 1
        %s544 = smul.addr %s543, 32
        %s545 = scalar_lea.vmem [#allocation7], %s544
        // Predicated region
        $region65: #{tpu_custom_call.1} parent=55 // pred_check
          %p546 = pneg %p167
        $region66: #{tpu_custom_call.1} parent=55 // pred_check_branch
          %548 = sbr.rel (%p546) target = $region68
        $region67: #{tpu_custom_call.1} parent=55 // pred_region
          %549 = dma.done %s542, 512
        $region68: #{tpu_custom_call.1} parent=55 // pred_fallthru
          _
        %s550 = sand.u32 %s32, 1
        %s551 = scalar_lea.sflag [#allocation9], %s550
        %s552 = sand.u32 %s190, 1
        %s553 = smul.addr %s552, 8
        %s554 = scalar_lea.vmem [#allocation8], %s553
        // Predicated region
        $region69: #{tpu_custom_call.1} parent=55 // pred_check
          %p555 = pneg %p203
        $region70: #{tpu_custom_call.1} parent=55 // pred_check_branch
          %557 = sbr.rel (%p555) target = $region72
        $region71: #{tpu_custom_call.1} parent=55 // pred_region
          %558 = dma.done %s551, 128
        $region72: #{tpu_custom_call.1} parent=55 // pred_fallthru
          _
        %s559 = sand.u32 %s32, 1
        %s560 = scalar_lea.sflag [#allocation9], %s559
        %s561 = sand.u32 %s226, 1
        %s562 = smul.addr %s561, 8
        %s563 = scalar_lea.vmem [#allocation10], %s562
        // Predicated region
        $region73: #{tpu_custom_call.1} parent=55 // pred_check
          %p564 = pneg %p239
        $region74: #{tpu_custom_call.1} parent=55 // pred_check_branch
          %566 = sbr.rel (%p564) target = $region76
        $region75: #{tpu_custom_call.1} parent=55 // pred_region
          %567 = dma.done %s560, 128
        $region76: #{tpu_custom_call.1} parent=55 // pred_fallthru
          _
        %s568 = smul.u32 4, %s37
        %p569 = scmp.lt.s32.totalorder %s36, 1
        %s570 = scalar_select %p569, %s36, 1
        %p571 = scmp.lt.s32.totalorder %s568, 15
        %s572 = scalar_select %p571, %s568, 15
        %s573 = smul.addr %s572, 2
        %s574 = smul.addr %s570, 32
        %s575 = sadd.s32 %s573, %s574
        %s576 = smul.addr %s575, 4
        %s577 = scalar_lea.vmem %s0, %s576
        %p578 = pneg %p67
        %p579 = pneg %p64
        %s580 = sand.u32 %s90, 1
        %s581 = scalar_lea.sflag [#allocation3], %s580
        %s582 = sand.u32 %s90, 1
        %s583 = smul.addr %s582, 8
        %s584 = scalar_lea.vmem [#allocation2], %s583
        %p585 = pneg %p103
        %p586 = pneg %p100
        %s587 = sand.u32 %s32, 1
        %s588 = scalar_lea.sflag [#allocation6], %s587
        %s589 = sand.u32 %s126, 1
        %s590 = smul.addr %s589, 8
        %s591 = scalar_lea.vmem [#allocation5], %s590
        %p592 = pneg %p139
        %p593 = pneg %p136
        %s594 = sand.u32 %s32, 1
        %s595 = scalar_lea.sflag [#allocation6], %s594
        %s596 = sand.u32 %s154, 1
        %s597 = smul.addr %s596, 32
        %s598 = scalar_lea.vmem [#allocation7], %s597
        %p599 = pneg %p167
        %p600 = pneg %p164
        %s601 = sand.u32 %s32, 1
        %s602 = scalar_lea.sflag [#allocation9], %s601
        %s603 = sand.u32 %s190, 1
        %s604 = smul.addr %s603, 8
        %s605 = scalar_lea.vmem [#allocation8], %s604
        %p606 = pneg %p203
        %p607 = pneg %p200
        %s608 = sand.u32 %s32, 1
        %s609 = scalar_lea.sflag [#allocation9], %s608
        %s610 = sand.u32 %s226, 1
        %s611 = smul.addr %s610, 8
        %s612 = scalar_lea.vmem [#allocation10], %s611
        %p613 = pneg %p239
        %p614 = pneg %p236
        %s615 = smul.u32 4, %s37
        %p616 = scmp.lt.s32.totalorder %s615, 15
        %s617 = scalar_select %p616, %s615, 15
        %s618 = smul.addr %s617, 2
        %s619 = smul.addr %s618, 4
        %s620 = scalar_lea.vmem %s6, %s619
        %p621 = pneg %p265
        %p622 = pneg %p262
        %p623 = pneg %p286
        %p624 = pneg %p283
        %p625 = pneg %p307
        %p626 = pneg %p304
        %p627 = pneg %p335
        %p628 = pneg %p332
        %s629 = sand.u32 %s322, 1
        %s630 = scalar_lea.sflag [#allocation4], %s629
        %s631 = sand.u32 %s322, 1
        %s632 = smul.addr %s631, 64
        %s633 = scalar_lea.vmem [#allocation11], %s632
        %s634 = smul.u32 4, %s37
        %p635 = scmp.lt.s32.totalorder %s36, 1
        %s636 = scalar_select %p635, %s36, 1
        %p637 = scmp.lt.s32.totalorder %s634, 15
        %s638 = scalar_select %p637, %s634, 15
        %s639 = smul.addr %s638, 2
        %s640 = smul.addr %s636, 32
        %s641 = sadd.s32 %s639, %s640
        %s642 = smul.addr %s641, 4
        %s643 = scalar_lea.vmem %s0, %s642
        %s644 = smul.u32 4, %s37
        %s645 = smul.u32 %s37, 4
        %s646 = ssub.s32 %s645, 1
        %p647 = scmp.gt.s32.totalorder %s646, 0
        %s648 = scalar_select %p647, %s646, 0
        %s649 = smul.u32 %s37, 4
        %s650 = sadd.s32 %s649, 4
        %p651 = scmp.lt.s32.totalorder %s650, 15
        %s652 = scalar_select %p651, %s650, 15
        %s653 = smul.u32 4, %s37
        %s654 = smul.u32 %s37, 4
        %s655 = ssub.s32 %s654, 1
        %p656 = scmp.gt.s32.totalorder %s655, 0
        %s657 = scalar_select %p656, %s655, 0
        %s658 = smul.u32 %s37, 4
        %s659 = sadd.s32 %s658, 4
        %p660 = scmp.lt.s32.totalorder %s659, 15
        %s661 = scalar_select %p660, %s659, 15
        %s662 = smul.u32 4, %s37
        %p663 = scmp.lt.s32.totalorder %s662, 15
        %s664 = scalar_select %p663, %s662, 15
        %s665 = smul.addr %s664, 2
        %s666 = smul.addr %s665, 4
        %s667 = scalar_lea.vmem %s6, %s666
        %s668 = smul.u32 4, %s37
        %s669 = smul.u32 4, %s37
        %p671 = scmp.gt.s32.totalorder %s37, 0
        %s672 = scalar_select %p671, 1.0, 0.0
        %p674 = scmp.ne.f32.partialorder %s672, %s672
        %s675 = sshrl.u32 %s672, 16
        %s676 = sand.u32 %s675, 1
        %s677 = sadd.s32 32767, %s676
        %s678 = sadd.s32 %s672, %s677
        %s679 = sand.u32 %s678, 4294901760
        %s680 = scalar_select %p674, 2143289344, %s679
        %s682 = sshrl.u32 %s680, 16
        %p683 = scmp.lt.s32.totalorder %s37, 3
        %s684 = scalar_select %p683, 1.0, 0.0
        %p686 = scmp.ne.f32.partialorder %s684, %s684
        %s687 = sshrl.u32 %s684, 16
        %s688 = sand.u32 %s687, 1
        %s689 = sadd.s32 32767, %s688
        %s690 = sadd.s32 %s684, %s689
        %s691 = sand.u32 %s690, 4294901760
        %s692 = scalar_select %p686, 2143289344, %s691
        %s694 = sshrl.u32 %s692, 16
        %v695 = vld [vmem:[%s643] sm:$0xf]
        %v696 = vld [vmem:[%s643 + $0x4] sm:$0xf]
        %v697 = vld [vmem:[%s643 + $0x8] sm:$0xf]
        %v698 = vld [vmem:[%s643 + $0xc] sm:$0xf]
        %v699 = vld [vmem:[%s643 + $0x10] sm:$0xf]
        %v700 = vld [vmem:[%s643 + $0x14] sm:$0xf]
        %v701 = vld [vmem:[%s643 + $0x18] sm:$0xf]
        %v702 = vld [vmem:[%s643 + $0x1c] sm:$0xf]
        %v703 = vld [vmem:[%s527] sm:$0xf]
        %v704 = vld [vmem:[%s527 + $0x4] sm:$0xf]
        %s705 = sshll.u32 %s682, 16
        %s706 = sor.u32 %s682, %s705
        %v707 = vstv %s706
        %v709 = vmul.bf16 %v703, %v707
        %v710 = vmul.bf16 %v704, %v707
        %v711 = vld [vmem:[%s536] sm:$0xf]
        %v712 = vld [vmem:[%s536 + $0x4] sm:$0xf]
        %s713 = sshll.u32 %s694, 16
        %s714 = sor.u32 %s694, %s713
        %v715 = vstv %s714
        %v717 = vmul.bf16 %v711, %v715
        %v718 = vmul.bf16 %v712, %v715
        %v719 = vld [vmem:[%s545] sm:$0xf]
        %v720 = vld [vmem:[%s545 + $0x4] sm:$0xf]
        %v721 = vld [vmem:[%s545 + $0x8] sm:$0xf]
        %v722 = vld [vmem:[%s545 + $0xc] sm:$0xf]
        %v723 = vld [vmem:[%s545 + $0x10] sm:$0xf]
        %v724 = vld [vmem:[%s545 + $0x14] sm:$0xf]
        %v725 = vld [vmem:[%s545 + $0x18] sm:$0xf]
        %v726 = vld [vmem:[%s545 + $0x1c] sm:$0xf]
        %v727 = vld [vmem:[%s554] sm:$0xf]
        %v728 = vld [vmem:[%s554 + $0x4] sm:$0xf]
        %v729 = vmul.bf16 %v727, %v707
        %v730 = vmul.bf16 %v728, %v707
        %v731 = vld [vmem:[%s563] sm:$0xf]
        %v732 = vld [vmem:[%s563 + $0x4] sm:$0xf]
        %v733 = vmul.bf16 %v731, %v715
        %v734 = vmul.bf16 %v732, %v715
        %v743 = vunpack.c.l.b16 %v709
        %v744 = vunpack.c.l.b16 %v710
        %v745 = vunpack.c.l.b16 %v695
        %v746 = vunpack.c.l.b16 %v696
        %v747 = vunpack.c.l.b16 %v697
        %v748 = vunpack.c.l.b16 %v698
        %v749 = vunpack.c.l.b16 %v699
        %v750 = vunpack.c.l.b16 %v700
        %v751 = vpack.c.b16 %v744, %v743
        %v752 = vpack.c.b16 %v746, %v745
        %v753 = vpack.c.b16 %v748, %v747
        %v754 = vpack.c.b16 %v750, %v749
        %v757 = vunpack.c.l.b16 %v701
        %v758 = vunpack.c.l.b16 %v702
        %v759 = vpack.c.b16 %v758, %v757
        %760 = vrot.lane.b32.xlu0 %v752, 32
        %v761 = vpop.permute.xlu0 %760
        %762 = vrot.lane.b32.xlu0 %v753, 32
        %v763 = vpop.permute.xlu0 %762
        %764 = vrot.lane.b32.xlu0 %v754, 32
        %v765 = vpop.permute.xlu0 %764
        %766 = vrot.lane.b32.xlu0 %v759, 32
        %v767 = vpop.permute.xlu0 %766
        %v770 = vunpack.c.l.b16 %v717
        %v771 = vunpack.c.l.b16 %v718
        %v772 = vpack.c.b16 %v771, %v770
        %773 = vrot.lane.b32.xlu0 %v753, 64
        %v774 = vpop.permute.xlu0 %773
        %775 = vrot.lane.b32.xlu0 %v754, 64
        %v776 = vpop.permute.xlu0 %775
        %777 = vrot.lane.b32.xlu0 %v759, 64
        %v778 = vpop.permute.xlu0 %777
        %779 = vrot.lane.b32.xlu0 %v772, 64
        %v780 = vpop.permute.xlu0 %779
        %v789 = vunpack.c.l.b16 %v729
        %v790 = vunpack.c.l.b16 %v730
        %v791 = vunpack.c.l.b16 %v719
        %v792 = vunpack.c.l.b16 %v720
        %v793 = vunpack.c.l.b16 %v721
        %v794 = vunpack.c.l.b16 %v722
        %v795 = vunpack.c.l.b16 %v723
        %v796 = vunpack.c.l.b16 %v724
        %v797 = vpack.c.b16 %v790, %v789
        %v798 = vpack.c.b16 %v792, %v791
        %v799 = vpack.c.b16 %v794, %v793
        %v800 = vpack.c.b16 %v796, %v795
        %801 = vrot.lane.b32.xlu0 %v797, 96
        %v802 = vpop.permute.xlu0 %801
        %803 = vrot.lane.b32.xlu0 %v798, 96
        %v804 = vpop.permute.xlu0 %803
        %805 = vrot.lane.b32.xlu0 %v799, 96
        %v806 = vpop.permute.xlu0 %805
        %807 = vrot.lane.b32.xlu0 %v800, 96
        %v808 = vpop.permute.xlu0 %807
        %v811 = vunpack.c.l.b16 %v725
        %v812 = vunpack.c.l.b16 %v726
        %v813 = vpack.c.b16 %v812, %v811
        %814 = vrot.lane.b32.xlu0 %v798, 112
        %v815 = vpop.permute.xlu0 %814
        %816 = vrot.lane.b32.xlu0 %v799, 112
        %v817 = vpop.permute.xlu0 %816
        %818 = vrot.lane.b32.xlu0 %v800, 112
        %v819 = vpop.permute.xlu0 %818
        %820 = vrot.lane.b32.xlu0 %v813, 112
        %v821 = vpop.permute.xlu0 %820
        %v824 = vunpack.c.l.b16 %v733
        %v825 = vunpack.c.l.b16 %v734
        %v826 = vpack.c.b16 %v825, %v824
        %vm827 = vcmask 261120
        %v830 = vsel %vm827, %v751, %v761
        %v833 = vsel %vm827, %v752, %v763
        %v836 = vsel %vm827, %v753, %v765
        %v839 = vsel %vm827, %v754, %v767
        %vm840 = vcmask 523264
        %v842 = vsel %vm840, %v830, %v774
        %v844 = vsel %vm840, %v833, %v776
        %v846 = vsel %vm840, %v836, %v778
        %v848 = vsel %vm840, %v839, %v780
        %vm849 = vcmask 785408
        %v851 = vsel %vm849, %v842, %v802
        %v853 = vsel %vm849, %v844, %v804
        %v855 = vsel %vm849, %v846, %v806
        %v857 = vsel %vm849, %v848, %v808
        %vm858 = vcmask 916480
        %v860 = vsel %vm858, %v851, %v815
        %v863 = vsel %vm858, %v853, %v817
        %v866 = vsel %vm858, %v855, %v819
        %v869 = vsel %vm858, %v857, %v821
        %v871 = vld [vmem:[%s7] sm:$0xf]
        %v872 = vld [vmem:[%s7 + $0x4] sm:$0xf]
        %v873 = vld [vmem:[%s7 + $0x8] sm:$0xf]
        %v874 = vld [vmem:[%s7 + $0xc] sm:$0xf]
        %v875 = vld [vmem:[%s7 + $0x10] sm:$0xf]
        %v876 = vld [vmem:[%s7 + $0x14] sm:$0xf]
        %v877 = vld [vmem:[%s7 + $0x18] sm:$0xf]
        %v878 = vld [vmem:[%s7 + $0x1c] sm:$0xf]
        %v879 = vld [vmem:[%s7 + $0x20] sm:$0xf]
        %v880 = vld [vmem:[%s7 + $0x24] sm:$0xf]
        %v881 = vld [vmem:[%s7 + $0x28] sm:$0xf]
        %v882 = vld [vmem:[%s7 + $0x2c] sm:$0xf]
        %v883 = vld [vmem:[%s7 + $0x30] sm:$0xf]
        %v884 = vld [vmem:[%s7 + $0x34] sm:$0xf]
        %v885 = vld [vmem:[%s7 + $0x38] sm:$0xf]
        %v886 = vld [vmem:[%s7 + $0x3c] sm:$0xf]
        %v887 = vld [vmem:[%s7 + $0x40] sm:$0xf]
        %v888 = vld [vmem:[%s7 + $0x44] sm:$0xf]
        %v907 = vunpack.c.l.b16 %v871
        %v908 = vunpack.c.l.b16 %v872
        %v909 = vunpack.c.l.b16 %v873
        %v910 = vunpack.c.l.b16 %v874
        %v911 = vunpack.c.l.b16 %v875
        %v912 = vunpack.c.l.b16 %v876
        %v913 = vunpack.c.l.b16 %v877
        %v914 = vunpack.c.l.b16 %v878
        %v915 = vunpack.c.l.b16 %v879
        %v916 = vunpack.c.l.b16 %v880
        %v917 = vunpack.c.l.b16 %v881
        %v918 = vunpack.c.l.b16 %v882
        %v919 = vunpack.c.l.b16 %v883
        %v920 = vunpack.c.l.b16 %v884
        %v921 = vunpack.c.l.b16 %v885
        %v922 = vunpack.c.l.b16 %v886
        %v923 = vunpack.c.l.b16 %v887
        %v924 = vunpack.c.l.b16 %v888
        %v925 = vpack.c.b16 %v908, %v907
        %v926 = vpack.c.b16 %v910, %v909
        %v927 = vpack.c.b16 %v912, %v911
        %v928 = vpack.c.b16 %v914, %v913
        %v929 = vpack.c.b16 %v916, %v915
        %v930 = vpack.c.b16 %v918, %v917
        %v931 = vpack.c.b16 %v920, %v919
        %v932 = vpack.c.b16 %v922, %v921
        %v933 = vpack.c.b16 %v924, %v923
        %vm943 = vcmask 130048
        %v945 = vsel %vm943, %v799, 0
        %v948 = vsel %vm943, %v800, 0
        %v951 = vsel %vm943, %v813, 0
        %v954 = vsel %vm943, %v826, 0
        %956 = vmatprep.subr.bf16.mxu0 0
        %957 = vmatpush1.bf16.msra.mxu0 %v925
        %958 = vmatprep.subr.bf16.mxu0 0
        %959 = vmatpush1.bf16.msra.mxu0 %v926
        %960 = vmatprep.subr.bf16.mxu0 0
        %961 = vmatpush1.bf16.msra.mxu0 %v927
        %962 = vmatprep.subr.bf16.mxu0 0
        %963 = vmatpush1.bf16.msra.mxu0 %v928
        %964 = vmatprep.subr.bf16.mxu0 0
        %965 = vmatpush1.bf16.msra.mxu0 %v929
        %966 = vmatprep.subr.bf16.mxu0 0
        %967 = vmatpush1.bf16.msra.mxu0 %v930
        %968 = vmatprep.subr.bf16.mxu0 0
        %969 = vmatpush1.bf16.msra.mxu0 %v931
        %970 = vmatprep.subr.bf16.mxu0 0
        %971 = vmatpush1.bf16.msra.mxu0 %v932
        %972 = vmatprep.subr.bf16.mxu0 0
        %973 = vmatpush1.bf16.msra.mxu0 %v933
        %974 = vmatprep.subr.bf16.mxu0 0
        %975 = vmatpush1.bf16.msra.mxu0 0
        %976 = vmatprep.subr.bf16.mxu0 0
        %977 = vmatpush1.bf16.msra.mxu0 0
        %978 = vmatprep.subr.bf16.mxu0 0
        %979 = vmatpush1.bf16.msra.mxu0 0
        %980 = vmatprep.subr.bf16.mxu0 0
        %981 = vmatpush1.bf16.msra.mxu0 0
        %982 = vmatprep.subr.bf16.mxu0 0
        %983 = vmatpush1.bf16.msra.mxu0 0
        %984 = vmatprep.subr.bf16.mxu0 0
        %985 = vmatpush1.bf16.msra.mxu0 0
        %986 = vmatprep.subr.bf16.mxu0 0
        %987 = vmatpush1.bf16.msra.mxu0 0
        %988 = vmatprep.mubr.bf16.mxu0 %v945
        %989 = vmatmul.mubr.bf16.gmra.mrb[0].mxu0 %v860
        %v990 = vpop.f32.mrb[0].mxu0
        %v991 = vadd.f32 0.0, %v990
        %v992 = vpop.f32.mrb[0].mxu0
        %v993 = vpop.f32.mrb[0].mxu0
        %v994 = vadd.f32 0.0, %v993
        %v995 = vpop.f32.mrb[0].mxu0
        %996 = vmatprep.mubr.bf16.mxu0 %v948
        %997 = vmatmul.mubr.bf16.gmra.mrb[0].mxu0 %v863
        %v998 = vpop.f32.mrb[0].mxu0
        %v999 = vadd.f32 0.0, %v998
        %v1000 = vpop.f32.mrb[0].mxu0
        %v1001 = vpop.f32.mrb[0].mxu0
        %v1002 = vadd.f32 0.0, %v1001
        %v1003 = vpop.f32.mrb[0].mxu0
        %1004 = vmatprep.mubr.bf16.mxu0 %v951
        %1005 = vmatmul.mubr.bf16.gmra.mrb[0].mxu0 %v866
        %v1006 = vpop.f32.mrb[0].mxu0
        %v1007 = vadd.f32 0.0, %v1006
        %v1008 = vpop.f32.mrb[0].mxu0
        %v1009 = vpop.f32.mrb[0].mxu0
        %v1010 = vadd.f32 0.0, %v1009
        %v1011 = vpop.f32.mrb[0].mxu0
        %1012 = vmatprep.mubr.bf16.mxu0 %v954
        %1013 = vmatmul.mubr.bf16.gmra.mrb[0].mxu0 %v869
        %v1014 = vpop.f32.mrb[0].mxu0
        %v1015 = vadd.f32 0.0, %v1014
        %v1016 = vpop.f32.mrb[0].mxu0
        %v1017 = vpop.f32.mrb[0].mxu0
        %v1018 = vadd.f32 0.0, %v1017
        %v1019 = vpop.f32.mrb[0].mxu0
        %1020 = vdwg.mxu0
        %s1021 = scalar_lea.vmem %s7, 72
        %v1022 = vld [vmem:[%s1021] sm:$0xf]
        %v1023 = vld [vmem:[%s1021 + $0x4] sm:$0xf]
        %v1024 = vld [vmem:[%s1021 + $0x8] sm:$0xf]
        %v1025 = vld [vmem:[%s1021 + $0xc] sm:$0xf]
        %v1026 = vld [vmem:[%s1021 + $0x10] sm:$0xf]
        %v1027 = vld [vmem:[%s1021 + $0x14] sm:$0xf]
        %v1028 = vld [vmem:[%s1021 + $0x18] sm:$0xf]
        %v1029 = vld [vmem:[%s1021 + $0x1c] sm:$0xf]
        %v1030 = vld [vmem:[%s1021 + $0x20] sm:$0xf]
        %v1031 = vld [vmem:[%s1021 + $0x24] sm:$0xf]
        %v1032 = vld [vmem:[%s1021 + $0x28] sm:$0xf]
        %v1033 = vld [vmem:[%s1021 + $0x2c] sm:$0xf]
        %v1034 = vld [vmem:[%s1021 + $0x30] sm:$0xf]
        %v1035 = vld [vmem:[%s1021 + $0x34] sm:$0xf]
        %v1036 = vld [vmem:[%s1021 + $0x38] sm:$0xf]
        %v1037 = vld [vmem:[%s1021 + $0x3c] sm:$0xf]
        %v1038 = vld [vmem:[%s1021 + $0x40] sm:$0xf]
        %v1039 = vld [vmem:[%s1021 + $0x44] sm:$0xf]
        %v1058 = vunpack.c.l.b16 %v1022
        %v1059 = vunpack.c.l.b16 %v1023
        %v1060 = vunpack.c.l.b16 %v1024
        %v1061 = vunpack.c.l.b16 %v1025
        %v1062 = vunpack.c.l.b16 %v1026
        %v1063 = vunpack.c.l.b16 %v1027
        %v1064 = vunpack.c.l.b16 %v1028
        %v1065 = vunpack.c.l.b16 %v1029
        %v1066 = vunpack.c.l.b16 %v1030
        %v1067 = vunpack.c.l.b16 %v1031
        %v1068 = vunpack.c.l.b16 %v1032
        %v1069 = vunpack.c.l.b16 %v1033
        %v1070 = vunpack.c.l.b16 %v1034
        %v1071 = vunpack.c.l.b16 %v1035
        %v1072 = vunpack.c.l.b16 %v1036
        %v1073 = vunpack.c.l.b16 %v1037
        %v1074 = vunpack.c.l.b16 %v1038
        %v1075 = vunpack.c.l.b16 %v1039
        %v1076 = vpack.c.b16 %v1059, %v1058
        %v1077 = vpack.c.b16 %v1061, %v1060
        %v1078 = vpack.c.b16 %v1063, %v1062
        %v1079 = vpack.c.b16 %v1065, %v1064
        %v1080 = vpack.c.b16 %v1067, %v1066
        %v1081 = vpack.c.b16 %v1069, %v1068
        %v1082 = vpack.c.b16 %v1071, %v1070
        %v1083 = vpack.c.b16 %v1073, %v1072
        %v1084 = vpack.c.b16 %v1075, %v1074
        %1094 = vmatprep.subr.bf16.mxu0 0
        %1095 = vmatpush1.bf16.msra.mxu0 %v1076
        %1096 = vmatprep.subr.bf16.mxu0 0
        %1097 = vmatpush1.bf16.msra.mxu0 %v1077
        %1098 = vmatprep.subr.bf16.mxu0 0
        %1099 = vmatpush1.bf16.msra.mxu0 %v1078
        %1100 = vmatprep.subr.bf16.mxu0 0
        %1101 = vmatpush1.bf16.msra.mxu0 %v1079
        %1102 = vmatprep.subr.bf16.mxu0 0
        %1103 = vmatpush1.bf16.msra.mxu0 %v1080
        %1104 = vmatprep.subr.bf16.mxu0 0
        %1105 = vmatpush1.bf16.msra.mxu0 %v1081
        %1106 = vmatprep.subr.bf16.mxu0 0
        %1107 = vmatpush1.bf16.msra.mxu0 %v1082
        %1108 = vmatprep.subr.bf16.mxu0 0
        %1109 = vmatpush1.bf16.msra.mxu0 %v1083
        %1110 = vmatprep.subr.bf16.mxu0 0
        %1111 = vmatpush1.bf16.msra.mxu0 %v1084
        %1112 = vmatprep.subr.bf16.mxu0 0
        %1113 = vmatpush1.bf16.msra.mxu0 0
        %1114 = vmatprep.subr.bf16.mxu0 0
        %1115 = vmatpush1.bf16.msra.mxu0 0
        %1116 = vmatprep.subr.bf16.mxu0 0
        %1117 = vmatpush1.bf16.msra.mxu0 0
        %1118 = vmatprep.subr.bf16.mxu0 0
        %1119 = vmatpush1.bf16.msra.mxu0 0
        %1120 = vmatprep.subr.bf16.mxu0 0
        %1121 = vmatpush1.bf16.msra.mxu0 0
        %1122 = vmatprep.subr.bf16.mxu0 0
        %1123 = vmatpush1.bf16.msra.mxu0 0
        %1124 = vmatprep.subr.bf16.mxu0 0
        %1125 = vmatpush1.bf16.msra.mxu0 0
        %1126 = vmatprep.mubr.bf16.mxu0 %v945
        %1127 = vmatmul.mubr.bf16.gmra.mrb[0].mxu0 %v860
        %v1128 = vpop.f32.mrb[0].mxu0
        %v1129 = vadd.f32 0.0, %v1128
        %v1130 = vpop.f32.mrb[0].mxu0
        %v1131 = vpop.f32.mrb[0].mxu0
        %v1132 = vadd.f32 0.0, %v1131
        %v1133 = vpop.f32.mrb[0].mxu0
        %1134 = vmatprep.mubr.bf16.mxu0 %v948
        %1135 = vmatmul.mubr.bf16.gmra.mrb[0].mxu0 %v863
        %v1136 = vpop.f32.mrb[0].mxu0
        %v1137 = vadd.f32 0.0, %v1136
        %v1138 = vpop.f32.mrb[0].mxu0
        %v1139 = vpop.f32.mrb[0].mxu0
        %v1140 = vadd.f32 0.0, %v1139
        %v1141 = vpop.f32.mrb[0].mxu0
        %1142 = vmatprep.mubr.bf16.mxu0 %v951
        %1143 = vmatmul.mubr.bf16.gmra.mrb[0].mxu0 %v866
        %v1144 = vpop.f32.mrb[0].mxu0
        %v1145 = vadd.f32 0.0, %v1144
        %v1146 = vpop.f32.mrb[0].mxu0
        %v1147 = vpop.f32.mrb[0].mxu0
        %v1148 = vadd.f32 0.0, %v1147
        %v1149 = vpop.f32.mrb[0].mxu0
        %1150 = vmatprep.mubr.bf16.mxu0 %v954
        %1151 = vmatmul.mubr.bf16.gmra.mrb[0].mxu0 %v869
        %v1152 = vpop.f32.mrb[0].mxu0
        %v1153 = vadd.f32 0.0, %v1152
        %v1154 = vpop.f32.mrb[0].mxu0
        %v1155 = vpop.f32.mrb[0].mxu0
        %v1156 = vadd.f32 0.0, %v1155
        %v1157 = vpop.f32.mrb[0].mxu0
        %1158 = vdwg.mxu0
        %s1159 = scalar_lea.vmem %s7, 144
        %v1160 = vld [vmem:[%s1159] sm:$0xf]
        %v1161 = vld [vmem:[%s1159 + $0x4] sm:$0xf]
        %v1162 = vld [vmem:[%s1159 + $0x8] sm:$0xf]
        %v1163 = vld [vmem:[%s1159 + $0xc] sm:$0xf]
        %v1164 = vld [vmem:[%s1159 + $0x10] sm:$0xf]
        %v1165 = vld [vmem:[%s1159 + $0x14] sm:$0xf]
        %v1166 = vld [vmem:[%s1159 + $0x18] sm:$0xf]
        %v1167 = vld [vmem:[%s1159 + $0x1c] sm:$0xf]
        %v1168 = vld [vmem:[%s1159 + $0x20] sm:$0xf]
        %v1169 = vld [vmem:[%s1159 + $0x24] sm:$0xf]
        %v1170 = vld [vmem:[%s1159 + $0x28] sm:$0xf]
        %v1171 = vld [vmem:[%s1159 + $0x2c] sm:$0xf]
        %v1172 = vld [vmem:[%s1159 + $0x30] sm:$0xf]
        %v1173 = vld [vmem:[%s1159 + $0x34] sm:$0xf]
        %v1174 = vld [vmem:[%s1159 + $0x38] sm:$0xf]
        %v1175 = vld [vmem:[%s1159 + $0x3c] sm:$0xf]
        %v1176 = vld [vmem:[%s1159 + $0x40] sm:$0xf]
        %v1177 = vld [vmem:[%s1159 + $0x44] sm:$0xf]
        %v1196 = vunpack.c.l.b16 %v1160
        %v1197 = vunpack.c.l.b16 %v1161
        %v1198 = vunpack.c.l.b16 %v1162
        %v1199 = vunpack.c.l.b16 %v1163
        %v1200 = vunpack.c.l.b16 %v1164
        %v1201 = vunpack.c.l.b16 %v1165
        %v1202 = vunpack.c.l.b16 %v1166
        %v1203 = vunpack.c.l.b16 %v1167
        %v1204 = vunpack.c.l.b16 %v1168
        %v1205 = vunpack.c.l.b16 %v1169
        %v1206 = vunpack.c.l.b16 %v1170
        %v1207 = vunpack.c.l.b16 %v1171
        %v1208 = vunpack.c.l.b16 %v1172
        %v1209 = vunpack.c.l.b16 %v1173
        %v1210 = vunpack.c.l.b16 %v1174
        %v1211 = vunpack.c.l.b16 %v1175
        %v1212 = vunpack.c.l.b16 %v1176
        %v1213 = vunpack.c.l.b16 %v1177
        %v1214 = vpack.c.b16 %v1197, %v1196
        %v1215 = vpack.c.b16 %v1199, %v1198
        %v1216 = vpack.c.b16 %v1201, %v1200
        %v1217 = vpack.c.b16 %v1203, %v1202
        %v1218 = vpack.c.b16 %v1205, %v1204
        %v1219 = vpack.c.b16 %v1207, %v1206
        %v1220 = vpack.c.b16 %v1209, %v1208
        %v1221 = vpack.c.b16 %v1211, %v1210
        %v1222 = vpack.c.b16 %v1213, %v1212
        %1232 = vmatprep.subr.bf16.mxu0 0
        %1233 = vmatpush1.bf16.msra.mxu0 %v1214
        %1234 = vmatprep.subr.bf16.mxu0 0
        %1235 = vmatpush1.bf16.msra.mxu0 %v1215
        %1236 = vmatprep.subr.bf16.mxu0 0
        %1237 = vmatpush1.bf16.msra.mxu0 %v1216
        %1238 = vmatprep.subr.bf16.mxu0 0
        %1239 = vmatpush1.bf16.msra.mxu0 %v1217
        %1240 = vmatprep.subr.bf16.mxu0 0
        %1241 = vmatpush1.bf16.msra.mxu0 %v1218
        %1242 = vmatprep.subr.bf16.mxu0 0
        %1243 = vmatpush1.bf16.msra.mxu0 %v1219
        %1244 = vmatprep.subr.bf16.mxu0 0
        %1245 = vmatpush1.bf16.msra.mxu0 %v1220
        %1246 = vmatprep.subr.bf16.mxu0 0
        %1247 = vmatpush1.bf16.msra.mxu0 %v1221
        %1248 = vmatprep.subr.bf16.mxu0 0
        %1249 = vmatpush1.bf16.msra.mxu0 %v1222
        %1250 = vmatprep.subr.bf16.mxu0 0
        %1251 = vmatpush1.bf16.msra.mxu0 0
        %1252 = vmatprep.subr.bf16.mxu0 0
        %1253 = vmatpush1.bf16.msra.mxu0 0
        %1254 = vmatprep.subr.bf16.mxu0 0
        %1255 = vmatpush1.bf16.msra.mxu0 0
        %1256 = vmatprep.subr.bf16.mxu0 0
        %1257 = vmatpush1.bf16.msra.mxu0 0
        %1258 = vmatprep.subr.bf16.mxu0 0
        %1259 = vmatpush1.bf16.msra.mxu0 0
        %1260 = vmatprep.subr.bf16.mxu0 0
        %1261 = vmatpush1.bf16.msra.mxu0 0
        %1262 = vmatprep.subr.bf16.mxu0 0
        %1263 = vmatpush1.bf16.msra.mxu0 0
        %1264 = vmatprep.mubr.bf16.mxu0 %v945
        %1265 = vmatmul.mubr.bf16.gmra.mrb[0].mxu0 %v860
        %v1266 = vpop.f32.mrb[0].mxu0
        %v1267 = vadd.f32 0.0, %v1266
        %v1268 = vpop.f32.mrb[0].mxu0
        %v1269 = vpop.f32.mrb[0].mxu0
        %v1270 = vadd.f32 0.0, %v1269
        %v1271 = vpop.f32.mrb[0].mxu0
        %1272 = vmatprep.mubr.bf16.mxu0 %v948
        %1273 = vmatmul.mubr.bf16.gmra.mrb[0].mxu0 %v863
        %v1274 = vpop.f32.mrb[0].mxu0
        %v1275 = vadd.f32 0.0, %v1274
        %v1276 = vpop.f32.mrb[0].mxu0
        %v1277 = vpop.f32.mrb[0].mxu0
        %v1278 = vadd.f32 0.0, %v1277
        %v1279 = vpop.f32.mrb[0].mxu0
        %1280 = vmatprep.mubr.bf16.mxu0 %v951
        %1281 = vmatmul.mubr.bf16.gmra.mrb[0].mxu0 %v866
        %v1282 = vpop.f32.mrb[0].mxu0
        %v1283 = vadd.f32 0.0, %v1282
        %v1284 = vpop.f32.mrb[0].mxu0
        %v1285 = vpop.f32.mrb[0].mxu0
        %v1286 = vadd.f32 0.0, %v1285
        %v1287 = vpop.f32.mrb[0].mxu0
        %1288 = vmatprep.mubr.bf16.mxu0 %v954
        %1289 = vmatmul.mubr.bf16.gmra.mrb[0].mxu0 %v869
        %v1290 = vpop.f32.mrb[0].mxu0
        %v1291 = vadd.f32 0.0, %v1290
        %v1292 = vpop.f32.mrb[0].mxu0
        %v1293 = vpop.f32.mrb[0].mxu0
        %v1294 = vadd.f32 0.0, %v1293
        %v1295 = vpop.f32.mrb[0].mxu0
        %1296 = vdwg.mxu0
        %vm1305 = vcmask 1040384
        %v1306 = vrot.slane %v991, 7
        %v1307 = vrot.slane %v994, 7
        %v1308 = vsel %vm1305, %v1306, %v1307
        %v1309 = vrot.slane %v999, 7
        %v1310 = vrot.slane %v1002, 7
        %v1311 = vsel %vm1305, %v1309, %v1310
        %v1312 = vrot.slane %v1007, 7
        %v1313 = vrot.slane %v1010, 7
        %v1314 = vsel %vm1305, %v1312, %v1313
        %v1315 = vrot.slane %v1015, 7
        %v1316 = vrot.slane %v1018, 7
        %v1317 = vsel %vm1305, %v1315, %v1316
        %v1326 = vsel %vm1305, 0.0, %v1306
        %v1327 = vsel %vm1305, 0.0, %v1309
        %v1328 = vsel %vm1305, 0.0, %v1312
        %v1329 = vsel %vm1305, 0.0, %v1315
        %v1330 = vadd.f32 %v1129, %v1326
        %v1331 = vadd.f32 %v1132, %v1308
        %v1332 = vadd.f32 %v1137, %v1327
        %v1333 = vadd.f32 %v1140, %v1311
        %v1334 = vadd.f32 %v1145, %v1328
        %v1335 = vadd.f32 %v1148, %v1314
        %v1336 = vadd.f32 %v1153, %v1329
        %v1337 = vadd.f32 %v1156, %v1317
        %vm1346 = vcmask 1046528
        %v1347 = vrot.slane %v1267, 1
        %v1348 = vrot.slane %v1270, 1
        %v1349 = vsel %vm1346, %v1347, %v1348
        %v1350 = vrot.slane %v1275, 1
        %v1351 = vrot.slane %v1278, 1
        %v1352 = vsel %vm1346, %v1350, %v1351
        %v1353 = vrot.slane %v1283, 1
        %v1354 = vrot.slane %v1286, 1
        %v1355 = vsel %vm1346, %v1353, %v1354
        %v1356 = vrot.slane %v1291, 1
        %v1357 = vrot.slane %v1294, 1
        %v1358 = vsel %vm1346, %v1356, %v1357
        %v1367 = vsel %vm1346, %v1348, 0.0
        %v1368 = vsel %vm1346, %v1351, 0.0
        %v1369 = vsel %vm1346, %v1354, 0.0
        %v1370 = vsel %vm1346, %v1357, 0.0
        %v1371 = vadd.f32 %v1330, %v1349
        %v1372 = vadd.f32 %v1331, %v1367
        %v1373 = vadd.f32 %v1332, %v1352
        %v1374 = vadd.f32 %v1333, %v1368
        %v1375 = vadd.f32 %v1334, %v1355
        %v1376 = vadd.f32 %v1335, %v1369
        %v1377 = vadd.f32 %v1336, %v1358
        %v1378 = vadd.f32 %v1337, %v1370
        %v1379 = vld [vmem:[%s8] sm:$0x1]
        %v1381 = vlaneseq
        %v1382 = vshrl.u32 %v1381, 7
        %v1383 = vsub.s32 0, %v1382
        %v1384 = vrot.slane %v1379, %v1383
        %v1386 = vadd.f32 %v1371, %v1384
        %v1387 = vadd.f32 %v1372, %v1384
        %v1388 = vadd.f32 %v1373, %v1384
        %v1389 = vadd.f32 %v1374, %v1384
        %v1390 = vadd.f32 %v1375, %v1384
        %v1391 = vadd.f32 %v1376, %v1384
        %v1392 = vadd.f32 %v1377, %v1384
        %v1393 = vadd.f32 %v1378, %v1384
        %v1394 = vld [vmem:[%s667] sm:$0xf]
        %v1395 = vld [vmem:[%s667 + $0x4] sm:$0xf]
        %v1396 = vld [vmem:[%s667 + $0x8] sm:$0xf]
        %v1397 = vld [vmem:[%s667 + $0xc] sm:$0xf]
        %v1398 = vld [vmem:[%s667 + $0x10] sm:$0xf]
        %v1399 = vld [vmem:[%s667 + $0x14] sm:$0xf]
        %v1400 = vld [vmem:[%s667 + $0x18] sm:$0xf]
        %v1401 = vld [vmem:[%s667 + $0x1c] sm:$0xf]
        %v1402 = vunpack.c.l.bf16 %v1394
        %v1403 = vunpack.c.l.bf16 %v1395
        %v1404 = vunpack.c.l.bf16 %v1396
        %v1405 = vunpack.c.l.bf16 %v1397
        %v1406 = vunpack.c.l.bf16 %v1398
        %v1407 = vunpack.c.l.bf16 %v1399
        %v1408 = vunpack.c.l.bf16 %v1400
        %v1409 = vunpack.c.l.bf16 %v1401
        %v1410 = vadd.f32 %v1386, %v1402
        %v1411 = vadd.f32 %v1387, %v1403
        %v1412 = vadd.f32 %v1388, %v1404
        %v1413 = vadd.f32 %v1389, %v1405
        %v1414 = vadd.f32 %v1390, %v1406
        %v1415 = vadd.f32 %v1391, %v1407
        %v1416 = vadd.f32 %v1392, %v1408
        %v1417 = vadd.f32 %v1393, %v1409
        %v1418 = vmax.f32 %v1410, 0.0
        %v1419 = vmax.f32 %v1411, 0.0
        %v1420 = vmax.f32 %v1412, 0.0
        %v1421 = vmax.f32 %v1413, 0.0
        %v1422 = vmax.f32 %v1414, 0.0
        %v1423 = vmax.f32 %v1415, 0.0
        %v1424 = vmax.f32 %v1416, 0.0
        %v1425 = vmax.f32 %v1417, 0.0
        %1426 = vst.msk [vmem:[%s633] sm:$0xff] %vm840, %v1418
        %1427 = vst.msk [vmem:[%s633 + $0x8] sm:$0xff] %vm840, %v1419
        %1428 = vst.msk [vmem:[%s633 + $0x10] sm:$0xff] %vm840, %v1420
        %1429 = vst.msk [vmem:[%s633 + $0x18] sm:$0xff] %vm840, %v1421
        %1430 = vst.msk [vmem:[%s633 + $0x20] sm:$0xff] %vm840, %v1422
        %1431 = vst.msk [vmem:[%s633 + $0x28] sm:$0xff] %vm840, %v1423
        %1432 = vst.msk [vmem:[%s633 + $0x30] sm:$0xff] %vm840, %v1424
        %1433 = vst.msk [vmem:[%s633 + $0x38] sm:$0xff] %vm840, %v1425
        %s1434 = sand.u32 %s322, 1
        %s1435 = scalar_lea.sflag [#allocation4], %s1434
        %s1436 = sand.u32 %s322, 1
        %s1437 = smul.addr %s1436, 64
        %s1438 = scalar_lea.vmem [#allocation11], %s1437
        // Predicated region
        $region77: #{tpu_custom_call.1} parent=55 // pred_check
          %p1439 = pneg %p332
        $region78: #{tpu_custom_call.1} parent=55 // pred_check_branch
          %1441 = sbr.rel (%p1439) target = $region80
        $region79: #{tpu_custom_call.1} parent=55 // pred_region
          %s1442 = smul.u32 4, %s37
          %s1444 = ssub.s32 1024, 1024
          %1445 = vsyncadd %s1435, %s1444
          %s1446 = smul.addr %s1442, 2
          %s1447 = smul.addr %s36, 32
          %s1448 = sadd.s32 %s1446, %s1447
          %s1449 = smul.addr %s1448, 128
          %s1450 = scalar_lea.hbm %s9, %s1449
          %s1451 = sshll.u32 %s1438, 4
          %s1452 = int_to_ptr.vmem [resolvable:$true] %s1451
          %1457 = dma.vmem_to_hbm [thread:$0]  %s1452, 1024, %s1450, %s1435, 128, 128, 8
        $region80: #{tpu_custom_call.1} parent=55 // pred_fallthru
          _
      $region56: #{tpu_custom_call.1} parent=5 // pred_fallthru
        _
      %p1458 = scmp.le.s32.totalorder 2, %s27
      // Predicated region
      $region81: #{tpu_custom_call.1} parent=5 // pred_check
        %p1459 = pneg %p1458
      $region82: #{tpu_custom_call.1} parent=5 // pred_check_branch
        %1461 = sbr.rel (%p1459) target = $region84
      $region83: #{tpu_custom_call.1} parent=5 // pred_region
        %s1462 = ssub.s32 %s27, 2
        // Predicated region
        $region85: #{tpu_custom_call.1} parent=83 // pred_check
          %p1463 = pneg %p338
        $region86: #{tpu_custom_call.1} parent=83 // pred_check_branch
          %1465 = sbr.rel (%p1463) target = $region88
        $region87: #{tpu_custom_call.1} parent=83 // pred_region
          %s1466 = sand.u32 %s323, 1
          %s1467 = scalar_lea.sflag [#allocation4], %s1466
          %s1468 = sand.u32 %s323, 1
          %s1469 = smul.addr %s1468, 64
          %s1470 = scalar_lea.vmem [#allocation11], %s1469
          %1471 = dma.done %s1467, 1024
        $region88: #{tpu_custom_call.1} parent=83 // pred_fallthru
          _
      $region84: #{tpu_custom_call.1} parent=5 // pred_fallthru
        _
    $region6: #{tpu_custom_call.1} parent=1 // loop_footer
      %s31 = sadd.s32 1, %s27
    $region7: #{tpu_custom_call.1} parent=1 // loop_footer_branch
      %26 = sbr.rel target = $region3
    $region8: #{tpu_custom_call.1} parent=1 // loop_exit
      _
    %1472 = vsyncpa [#allocation3], 1
    %s1473 = scalar_lea.sflag [#allocation3], 1
    %1474 = vsyncpa %s1473, 1
    %1475 = vsyncpa [#allocation6], 1
    %s1476 = scalar_lea.sflag [#allocation6], 1
    %1477 = vsyncpa %s1476, 1
    %1478 = vsyncpa [#allocation9], 1
    %s1479 = scalar_lea.sflag [#allocation9], 1
    %1480 = vsyncpa %s1479, 1
    %1481 = vsyncpa [#allocation4], 1
    %s1482 = scalar_lea.sflag [#allocation4], 1
    %1483 = vsyncpa %s1482, 1

</llo_original>
